<compile_context>
chip_gen: v7x
topology: tpu7x:2x2x1
jax: 0.10.0
libtpu: 0.0.40
codegen_flags: <defaults>
</compile_context>

<pallas_src>
import math

import numpy as np

import jax
import jax.numpy as jnp
from jax.experimental import pallas as pl
from jax.experimental.pallas import tpu as pltpu  # noqa: F401  (TPU backend)

# ---- model config (small, consistent with the module's forward) ----
VOCAB = 16     # vocab_size
D     = 32     # d_model
H     = 4      # nhead
DH    = D // H # head dim = 8
L     = 2      # num_transformer_layers
HL    = 2      # num_high_level_layers
A     = 4      # num_actions
S     = 16     # board has 16 token positions (registered `positions` buffer)
B     = 2      # batch
EPS   = 1e-5   # nn.LayerNorm default eps

FF  = 4 * D    # feed-forward width = 128
BS  = B * S    # 32 rows (batch folded into sublanes)
BHS = H * BS   # 128 block-diag K^T columns / block-diag V rows, order (h, b, k)

# -------- packed-slab layouts --------------------------------------------
# w_slab : bf16 [NW, D, FF]  (row-of-[32,128] weight tiles, left-aligned)
#   per layer l: 3l+0 = Wq*scale|Wk|Wv (cols 0:96), 3l+1 = Wo (0:32), 3l+2 = W1
#   3L+j  : high-level Linear W_j (cols 0:32)
#   3L+HL : policy-head W (cols 0:A valid, rest zero)
#   3L+HL+1: embedding table (rows 0:16, cols 0:32)
NW = 3 * L + HL + 2
WROW_HL, WROW_POL, WROW_EMB = 3 * L, 3 * L + HL, 3 * L + HL + 1
# t_slab : bf16 [L+1, FF, D]  ("tall" tiles): W2_l natural [FF,D]; index L = head_mask
NT = L + 1
# v_slab : f32 [NV, FF]  (bias / LN vectors, left-aligned)
#   per layer l (base 8l): ln1_g, ln1_b, bq*scale|bk|bv, bo, ln2_g, ln2_b, b1, b2
#   8L+3j+{0,1,2}: high-level bias_j, ln_gamma_j, ln_beta_j
#   8L+3HL       : policy bias ;  8L+3HL+1 .. +BS: positional emb tiled per board
VROW_POL_B = 8 * L + 3 * HL
VROW_POS   = VROW_POL_B + 1
NV = VROW_POS + BS
# m_slab : bf16 [NM, FF]  constants: head_maskT (32) | att_bias (32) | pool (8)
NM = 2 * D + 8


def _layer_norm(v, g, b):
    mu = jnp.mean(v, axis=-1, keepdims=True)
    var = jnp.mean((v - mu) ** 2, axis=-1, keepdims=True)
    return (v - mu) * jax.lax.rsqrt(var + EPS) * g + b


def policy_kernel(tok_ref, w_ref, t_ref, v_ref, m_ref, out_ref):
    f32, bf16 = jnp.float32, jnp.bfloat16

    def vrow(i, cols=D):
        return v_ref[i:i + 1, 0:cols]                  # [1, cols] f32

    # ---- constants (precomputed host-side), hoisted out of the layer loop ----
    head_maskT = m_ref[0:D, :].astype(f32)             # [32,128]: keep rows d of column's head
    att_bias   = m_ref[D:2 * D, :].astype(f32)         # [32,128]: 0 same-board / -1e30 cross-board
    pool16     = m_ref[2 * D:2 * D + 8, 0:BS]          # [8,32] bf16 mean-pool matrix (rows>=B zero)
    head_mask16 = t_ref[L]                             # [128,32] bf16: keep lanes d of row's head
    head_maskF  = head_mask16.astype(f32)
    pos_rep    = v_ref[VROW_POS:VROW_POS + BS, 0:D]    # [32,32] f32 positional emb (tiled over boards)

    # ---- embedding gather as a one-hot matmul + positional add (in-kernel) ----
    tok = tok_ref[...]                                              # [32,1] int32
    vid = jax.lax.broadcasted_iota(jnp.int32, (BS, VOCAB), 1)
    oh16 = (tok == vid).astype(f32).astype(bf16)                    # [32,16] one-hot
    emb16 = w_ref[WROW_EMB, 0:VOCAB, 0:D]                           # [16,32] bf16
    x = jnp.dot(oh16, emb16, preferred_element_type=f32) + pos_rep  # [32,32] f32

    # ---------------- transformer encoder (norm_first=True) ----------------
    for l in range(L):                                 # static, unrolled
        wq, vb = 3 * l, 8 * l

        # --- self-attention block: x = x + Wo * MHA(LN1(x)) + bo
        h = _layer_norm(x, vrow(vb + 0), vrow(vb + 1))                        # [32,32] f32
        qkv = (jnp.dot(h.astype(bf16), w_ref[wq + 0, :, 0:3 * D],
                       preferred_element_type=f32)
               + vrow(vb + 2, 3 * D))                  # fused Q|K|V, scale folded into Q
        q16 = qkv[:, 0:D].astype(bf16)
        kT = qkv[:, D:2 * D].T                         # single small [32,32] f32 transpose
        # block-diagonal K^T / V: tile the projected tiles and mask per head
        kbdT16 = (jnp.concatenate([kT] * H, axis=1) * head_maskT).astype(bf16)        # [32,128]
        vbd16 = (jnp.concatenate([qkv[:, 2 * D:3 * D]] * H, axis=0)
                 * head_maskF).astype(bf16)                                           # [128,32]

        # all heads x both boards in ONE plain [32,32]@[32,128] score matmul
        s = jnp.dot(q16, kbdT16, preferred_element_type=f32) + att_bias
        s = s - jnp.max(s, axis=-1, keepdims=True)     # max over in-board cols only
        e16 = jnp.exp(s).astype(bf16)                  # cross-board terms underflow to 0
        ctx = jnp.dot(e16, vbd16, preferred_element_type=f32)            # [32,32] head-interleaved
        denom = jnp.dot(e16, head_mask16, preferred_element_type=f32)    # per-head softmax sums
        ctx = ctx * pl.reciprocal(denom, approx=True)
        x = x + (jnp.dot(ctx.astype(bf16), w_ref[wq + 1, :, 0:D],
                         preferred_element_type=f32) + vrow(vb + 3))

        # --- feed-forward block: x = x + W2 relu(W1 LN2(x) + b1) + b2
        h2 = _layer_norm(x, vrow(vb + 4), vrow(vb + 5))
        ff = jnp.dot(h2.astype(bf16), w_ref[wq + 2, :, :],
                     preferred_element_type=f32) + vrow(vb + 6, FF)       # [32,128]
        ff = jnp.maximum(ff, 0.0)                                         # relu (default)
        ff = jnp.dot(ff.astype(bf16), t_ref[l],                           # W2 natural [FF,D]
                     preferred_element_type=f32) + vrow(vb + 7)
        x = x + ff

    # ---- mean pool over the 16 board positions (one tiny matmul) ----
    pooled = jnp.dot(pool16, x.astype(bf16), preferred_element_type=f32)  # [8,32]; rows>=B are zero

    # ---- high_level: [Linear -> LayerNorm -> GELU -> Dropout(no-op)] x HL ----
    for j in range(HL):
        pooled = (jnp.dot(pooled.astype(bf16), w_ref[WROW_HL + j, :, 0:D],
                          preferred_element_type=f32) + vrow(8 * L + 3 * j + 0))
        pooled = _layer_norm(pooled, vrow(8 * L + 3 * j + 1), vrow(8 * L + 3 * j + 2))
        # exact (erf) GELU, matching nn.GELU() default
        pooled = 0.5 * pooled * (1.0 + jax.lax.erf(pooled * (1.0 / math.sqrt(2.0))))

    # ---- policy head; dense (8,128) store (wrapper slices [:B, :A]) ----
    out_ref[...] = (jnp.dot(pooled.astype(bf16), w_ref[WROW_POL, :, :],
                            preferred_element_type=f32)
                    + v_ref[VROW_POL_B:VROW_POL_B + 1, :])


def pack_params(emb_table, pos_table, params):
    """One-time (load-time) packing of the module params into 4 slabs."""
    (ln1g, ln1b, wqkv, bqkv, wo, bo, ln2g, ln2b, w1, b1, w2, b2,
     hlw, hlb, hlg, hlbt, wp, bp) = params
    scale = 1.0 / math.sqrt(DH)

    w_slab = np.zeros((NW, D, FF), np.float32)
    t_slab = np.zeros((NT, FF, D), np.float32)
    v_slab = np.zeros((NV, FF), np.float32)
    m_slab = np.zeros((NM, FF), np.float32)

    for l in range(L):
        wq, vb = 3 * l, 8 * l
        w_slab[wq + 0, :, 0:D]         = np.asarray(wqkv[l, :, 0:D]) * scale   # Wq (scale folded)
        w_slab[wq + 0, :, D:2 * D]     = np.asarray(wqkv[l, :, D:2 * D])       # Wk
        w_slab[wq + 0, :, 2 * D:3 * D] = np.asarray(wqkv[l, :, 2 * D:3 * D])   # Wv
        w_slab[wq + 1, :, 0:D] = np.asarray(wo[l])
        w_slab[wq + 2, :, :]   = np.asarray(w1[l])
        t_slab[l]              = np.asarray(w2[l])                             # natural [FF, D]
        v_slab[vb + 0, 0:D] = np.asarray(ln1g[l, 0])
        v_slab[vb + 1, 0:D] = np.asarray(ln1b[l, 0])
        v_slab[vb + 2, 0:D]         = np.asarray(bqkv[l, 0, 0:D]) * scale      # bq (scale folded)
        v_slab[vb + 2, D:2 * D]     = np.asarray(bqkv[l, 0, D:2 * D])
        v_slab[vb + 2, 2 * D:3 * D] = np.asarray(bqkv[l, 0, 2 * D:3 * D])
        v_slab[vb + 3, 0:D] = np.asarray(bo[l, 0])
        v_slab[vb + 4, 0:D] = np.asarray(ln2g[l, 0])
        v_slab[vb + 5, 0:D] = np.asarray(ln2b[l, 0])
        v_slab[vb + 6, :]   = np.asarray(b1[l, 0])
        v_slab[vb + 7, 0:D] = np.asarray(b2[l, 0])
    for j in range(HL):
        w_slab[WROW_HL + j, :, 0:D] = np.asarray(hlw[j])
        v_slab[8 * L + 3 * j + 0, 0:D] = np.asarray(hlb[j, 0])
        v_slab[8 * L + 3 * j + 1, 0:D] = np.asarray(hlg[j, 0])
        v_slab[8 * L + 3 * j + 2, 0:D] = np.asarray(hlbt[j, 0])
    w_slab[WROW_POL, :, 0:A] = np.asarray(wp)
    w_slab[WROW_EMB, 0:VOCAB, 0:D] = np.asarray(emb_table)
    v_slab[VROW_POL_B, 0:A] = np.asarray(bp[0])
    v_slab[VROW_POS:VROW_POS + BS, 0:D] = np.tile(np.asarray(pos_table), (B, 1))

    # ---- constant masks (host-precomputed) ----
    d = np.arange(D)
    c = np.arange(BHS)          # block-diag column/row order (h, b, k)
    r = np.arange(BS)           # activation row order (b, s)
    # K^T block-diag mask: keep row d iff it belongs to the column's head
    m_slab[0:D, :] = (d[:, None] // DH == c[None, :] // BS).astype(np.float32)
    # cross-board additive bias on scores (0 same board, -1e30 otherwise)
    m_slab[D:2 * D, :] = np.where(r[:, None] // S == (c[None, :] % BS) // S, 0.0, -1e30)
    # mean-pool matrix, padded to 8 sublanes (rows >= B stay zero)
    m_slab[2 * D:2 * D + B, 0:BS] = (np.arange(B)[:, None] == r[None, :] // S) / S
    # V block-diag / denominator mask: keep lane d iff it belongs to the row's head
    t_slab[L] = (c[:, None] // BS == d[None, :] // DH).astype(np.float32)

    return (jnp.asarray(w_slab, jnp.bfloat16), jnp.asarray(t_slab, jnp.bfloat16),
            jnp.asarray(v_slab, jnp.float32), jnp.asarray(m_slab, jnp.bfloat16))


@jax.jit
def conv_transformer_policy(tokens, w_slab, t_slab, v_slab, m_slab):
    """tokens: [B, 16] int32 board-state tokens -> [B, num_actions] logits."""
    tok = tokens.reshape(BS, 1).astype(jnp.int32)     # contiguous no-op reshape
    # Gridless call: every operand (~130 KiB) lives whole in VMEM; zero grid
    # overhead, 5 input DMAs, one dense (8,128) output store.
    out = pl.pallas_call(
        policy_kernel,
        out_shape=jax.ShapeDtypeStruct((8, 128), jnp.float32),
    )(tok, w_slab, t_slab, v_slab, m_slab)
    return out[:B, :A]


def init_params(key):
    """Deterministic synthetic init (mirrors shapes of the PyTorch module)."""
    ks = iter(jax.random.split(key, 32))

    def xavier(fan_in, fan_out, shape, gain=0.5):
        std = gain * math.sqrt(2.0 / (fan_in + fan_out))
        return std * jax.random.normal(next(ks), shape, dtype=jnp.float32)

    ln1g = jnp.ones((L, 1, D), jnp.float32)
    ln1b = jnp.zeros((L, 1, D), jnp.float32)
    wqkv = xavier(D, 3 * D, (L, D, 3 * D))
    bqkv = jnp.zeros((L, 1, 3 * D), jnp.float32)
    wo = xavier(D, D, (L, D, D))
    bo = jnp.zeros((L, 1, D), jnp.float32)
    ln2g = jnp.ones((L, 1, D), jnp.float32)
    ln2b = jnp.zeros((L, 1, D), jnp.float32)
    w1 = xavier(D, 4 * D, (L, D, 4 * D))
    b1 = jnp.zeros((L, 1, 4 * D), jnp.float32)
    w2 = xavier(4 * D, D, (L, 4 * D, D))
    b2 = jnp.zeros((L, 1, D), jnp.float32)
    hlw = xavier(D, D, (HL, D, D))
    hlb = jnp.zeros((HL, 1, D), jnp.float32)
    hlg = jnp.ones((HL, 1, D), jnp.float32)
    hlbt = jnp.zeros((HL, 1, D), jnp.float32)
    wp = xavier(D, A, (D, A))
    bp = jnp.zeros((1, A), jnp.float32)

    emb_table = 0.1 * jax.random.normal(next(ks), (VOCAB, D), dtype=jnp.float32)
    pos_table = 0.1 * jax.random.normal(next(ks), (S, D), dtype=jnp.float32)

    params = (ln1g, ln1b, wqkv, bqkv, wo, bo, ln2g, ln2b, w1, b1, w2, b2,
              hlw, hlb, hlg, hlbt, wp, bp)
    return emb_table, pos_table, params


def reference_forward(x_emb, params):
    """Pure-JAX reference mirroring the PyTorch forward (eval mode)."""
    (ln1g, ln1b, wqkv, bqkv, wo, bo, ln2g, ln2b, w1, b1, w2, b2,
     hlw, hlb, hlg, hlbt, wp, bp) = params

    def ln(v, g, b):
        mu = v.mean(-1, keepdims=True)
        var = ((v - mu) ** 2).mean(-1, keepdims=True)
        return (v - mu) / jnp.sqrt(var + EPS) * g + b

    x = x_emb
    scale = 1.0 / math.sqrt(DH)
    for l in range(L):
        h = ln(x, ln1g[l, 0], ln1b[l, 0])
        qkv = h @ wqkv[l] + bqkv[l, 0]
        q = qkv[..., :D].reshape(B, S, H, DH)
        k = qkv[..., D:2 * D].reshape(B, S, H, DH)
        v = qkv[..., 2 * D:].reshape(B, S, H, DH)
        s = jnp.einsum('bqhd,bkhd->bhqk', q, k) * scale
        p = jax.nn.softmax(s, axis=-1)
        ctx = jnp.einsum('bhqk,bkhd->bqhd', p, v).reshape(B, S, D)
        x = x + ctx @ wo[l] + bo[l, 0]
        h2 = ln(x, ln2g[l, 0], ln2b[l, 0])
        ff = jax.nn.relu(h2 @ w1[l] + b1[l, 0]) @ w2[l] + b2[l, 0]
        x = x + ff
    pooled = x.mean(axis=1)
    for j in range(HL):
        pooled = pooled @ hlw[j] + hlb[j, 0]
        pooled = ln(pooled, hlg[j, 0], hlbt[j, 0])
        pooled = 0.5 * pooled * (1.0 + jax.lax.erf(pooled / math.sqrt(2.0)))
    return pooled @ wp + bp


if __name__ == "__main__":
    key = jax.random.PRNGKey(0)
    k_tok, k_par = jax.random.split(key)
    emb_table, pos_table, params = init_params(k_par)

    tokens = jax.random.randint(k_tok, (B, S), 0, VOCAB)          # [B, 16] board tokens

    w_slab, t_slab, v_slab, m_slab = pack_params(emb_table, pos_table, params)

    logits = conv_transformer_policy(tokens, w_slab, t_slab, v_slab, m_slab)
    logits = jax.block_until_ready(logits)
    assert logits.shape == (B, A)

    # pure-JAX reference (embedding gather done in f32 outside, as the module does)
    x_emb = emb_table[tokens] + pos_table[None, :, :]             # [B, S, D]
    ref = reference_forward(x_emb, params)
    if not jnp.allclose(logits, ref, atol=1e-2, rtol=1e-2):
        raise AssertionError(
            f"kernel mismatch: max abs err = {float(jnp.max(jnp.abs(logits - ref)))}")

    print("KERNEL_OK")
</pallas_src>

<mosaic_0001>
module attributes {stable_mosaic.version = 11 : i64} {
  func.func @policy_kernel(%arg0: memref<32x1xi32, #tpu.memory_space<vmem>>, %arg1: memref<10x32x128xbf16, #tpu.memory_space<vmem>>, %arg2: memref<3x128x32xbf16, #tpu.memory_space<vmem>>, %arg3: memref<55x128xf32, #tpu.memory_space<vmem>>, %arg4: memref<72x128xbf16, #tpu.memory_space<vmem>>, %arg5: memref<8x128xf32, #tpu.memory_space<vmem>>) attributes {dimension_semantics = [], scalar_prefetch = 0 : i64, scratch_operands = 0 : i64, tpu.core_type = #tpu.core_type<tc>} {
    %c0 = arith.constant 0 : index
    %c0_0 = arith.constant 0 : index
    %0 = vector.load %arg4[%c0, %c0_0] : memref<72x128xbf16, #tpu.memory_space<vmem>>, vector<32x128xbf16>
    %1 = arith.extf %0 : vector<32x128xbf16> to vector<32x128xf32>
    %c32 = arith.constant 32 : index
    %c0_1 = arith.constant 0 : index
    %2 = vector.load %arg4[%c32, %c0_1] : memref<72x128xbf16, #tpu.memory_space<vmem>>, vector<32x128xbf16>
    %3 = arith.extf %2 : vector<32x128xbf16> to vector<32x128xf32>
    %c64 = arith.constant 64 : index
    %c0_2 = arith.constant 0 : index
    %4 = vector.load %arg4[%c64, %c0_2] : memref<72x128xbf16, #tpu.memory_space<vmem>>, vector<8x32xbf16>
    %c2 = arith.constant 2 : index
    %c0_3 = arith.constant 0 : index
    %c0_4 = arith.constant 0 : index
    %5 = vector.load %arg2[%c2, %c0_3, %c0_4] : memref<3x128x32xbf16, #tpu.memory_space<vmem>>, vector<1x128x32xbf16>
    %6 = vector.shape_cast %5 : vector<1x128x32xbf16> to vector<128x32xbf16>
    %7 = arith.extf %6 : vector<128x32xbf16> to vector<128x32xf32>
    %c23 = arith.constant 23 : index
    %c0_5 = arith.constant 0 : index
    %8 = vector.load %arg3[%c23, %c0_5] : memref<55x128xf32, #tpu.memory_space<vmem>>, vector<32x32xf32>
    %c0_6 = arith.constant 0 : index
    %c0_7 = arith.constant 0 : index
    %9 = vector.load %arg0[%c0_6, %c0_7] : memref<32x1xi32, #tpu.memory_space<vmem>>, vector<32x1xi32>
    %10 = tpu.iota {dimensions = array<i32: 1>} : vector<32x16xi32>
    %11 = vector.broadcast %9 : vector<32x1xi32> to vector<32x16xi32>
    %12 = arith.cmpi eq, %11, %10 : vector<32x16xi32>
    %13 = arith.extui %12 : vector<32x16xi1> to vector<32x16xi32>
    %14 = arith.sitofp %13 : vector<32x16xi32> to vector<32x16xf32>
    %15 = arith.truncf %14 : vector<32x16xf32> to vector<32x16xbf16>
    %c9 = arith.constant 9 : index
    %c0_8 = arith.constant 0 : index
    %c0_9 = arith.constant 0 : index
    %16 = vector.load %arg1[%c9, %c0_8, %c0_9] : memref<10x32x128xbf16, #tpu.memory_space<vmem>>, vector<1x16x32xbf16>
    %17 = vector.shape_cast %16 : vector<1x16x32xbf16> to vector<16x32xbf16>
    %cst = arith.constant dense<0.000000e+00> : vector<32x32xf32>
    %18 = tpu.matmul %15, %17, %cst {dimension_numbers = #tpu.dot_dimension_numbers<[1], [0], [0], [1], [0, 0, 1, 1], [], []>} : vector<32x16xbf16>, vector<16x32xbf16>, vector<32x32xf32> -> vector<32x32xf32>
    %19 = arith.addf %18, %8 : vector<32x32xf32>
    %c0_10 = arith.constant 0 : index
    %c0_11 = arith.constant 0 : index
    %20 = vector.load %arg3[%c0_10, %c0_11] : memref<55x128xf32, #tpu.memory_space<vmem>>, vector<1x32xf32>
    %c1 = arith.constant 1 : index
    %c0_12 = arith.constant 0 : index
    %21 = vector.load %arg3[%c1, %c0_12] : memref<55x128xf32, #tpu.memory_space<vmem>>, vector<1x32xf32>
    %cst_13 = arith.constant dense<0.000000e+00> : vector<32xf32>
    %22 = vector.multi_reduction <add>, %19, %cst_13 [1] : vector<32x32xf32> to vector<32xf32>
    %23 = vector.shape_cast %22 : vector<32xf32> to vector<32x1xf32>
    %cst_14 = arith.constant 3.200000e+01 : f32
    %24 = vector.broadcast %cst_14 : f32 to vector<32x1xf32>
    %25 = arith.divf %23, %24 : vector<32x1xf32>
    %26 = vector.broadcast %25 : vector<32x1xf32> to vector<32x32xf32>
    %27 = arith.subf %19, %26 : vector<32x32xf32>
    %28 = arith.mulf %27, %27 : vector<32x32xf32>
    %cst_15 = arith.constant dense<0.000000e+00> : vector<32xf32>
    %29 = vector.multi_reduction <add>, %28, %cst_15 [1] : vector<32x32xf32> to vector<32xf32>
    %30 = vector.shape_cast %29 : vector<32xf32> to vector<32x1xf32>
    %cst_16 = arith.constant 3.200000e+01 : f32
    %31 = vector.broadcast %cst_16 : f32 to vector<32x1xf32>
    %32 = arith.divf %30, %31 : vector<32x1xf32>
    %33 = vector.broadcast %25 : vector<32x1xf32> to vector<32x32xf32>
    %34 = arith.subf %19, %33 : vector<32x32xf32>
    %cst_17 = arith.constant 9.99999974E-6 : f32
    %35 = vector.broadcast %cst_17 : f32 to vector<32x1xf32>
    %36 = arith.addf %32, %35 : vector<32x1xf32>
    %37 = math.rsqrt %36 : vector<32x1xf32>
    %38 = vector.broadcast %37 : vector<32x1xf32> to vector<32x32xf32>
    %39 = arith.mulf %34, %38 : vector<32x32xf32>
    %40 = vector.broadcast %20 : vector<1x32xf32> to vector<32x32xf32>
    %41 = arith.mulf %39, %40 : vector<32x32xf32>
    %42 = vector.broadcast %21 : vector<1x32xf32> to vector<32x32xf32>
    %43 = arith.addf %41, %42 : vector<32x32xf32>
    %44 = arith.truncf %43 : vector<32x32xf32> to vector<32x32xbf16>
    %c0_18 = arith.constant 0 : index
    %c0_19 = arith.constant 0 : index
    %c0_20 = arith.constant 0 : index
    %45 = vector.load %arg1[%c0_18, %c0_19, %c0_20] : memref<10x32x128xbf16, #tpu.memory_space<vmem>>, vector<1x32x96xbf16>
    %46 = vector.shape_cast %45 : vector<1x32x96xbf16> to vector<32x96xbf16>
    %cst_21 = arith.constant dense<0.000000e+00> : vector<32x96xf32>
    %47 = tpu.matmul %44, %46, %cst_21 {dimension_numbers = #tpu.dot_dimension_numbers<[1], [0], [0], [1], [0, 0, 1, 1], [], []>} : vector<32x32xbf16>, vector<32x96xbf16>, vector<32x96xf32> -> vector<32x96xf32>
    %c2_22 = arith.constant 2 : index
    %c0_23 = arith.constant 0 : index
    %48 = vector.load %arg3[%c2_22, %c0_23] : memref<55x128xf32, #tpu.memory_space<vmem>>, vector<1x96xf32>
    %49 = vector.broadcast %48 : vector<1x96xf32> to vector<32x96xf32>
    %50 = arith.addf %47, %49 : vector<32x96xf32>
    %51 = vector.extract_strided_slice %50 {offsets = [0, 0], sizes = [32, 32], strides = [1, 1]} : vector<32x96xf32> to vector<32x32xf32>
    %52 = arith.truncf %51 : vector<32x32xf32> to vector<32x32xbf16>
    %53 = vector.extract_strided_slice %50 {offsets = [0, 32], sizes = [32, 32], strides = [1, 1]} : vector<32x96xf32> to vector<32x32xf32>
    %54 = tpu.transpose %53, [1, 0] : vector<32x32xf32> -> vector<32x32xf32>
    %55 = tpu.concatenate %54, %54, %54, %54 in 1 : vector<32x32xf32>, vector<32x32xf32>, vector<32x32xf32>, vector<32x32xf32> -> vector<32x128xf32>
    %56 = arith.mulf %55, %1 : vector<32x128xf32>
    %57 = arith.truncf %56 : vector<32x128xf32> to vector<32x128xbf16>
    %58 = vector.extract_strided_slice %50 {offsets = [0, 64], sizes = [32, 32], strides = [1, 1]} : vector<32x96xf32> to vector<32x32xf32>
    %59 = tpu.concatenate %58, %58, %58, %58 in 0 : vector<32x32xf32>, vector<32x32xf32>, vector<32x32xf32>, vector<32x32xf32> -> vector<128x32xf32>
    %60 = arith.mulf %59, %7 : vector<128x32xf32>
    %61 = arith.truncf %60 : vector<128x32xf32> to vector<128x32xbf16>
    %cst_24 = arith.constant dense<0.000000e+00> : vector<32x128xf32>
    %62 = tpu.matmul %52, %57, %cst_24 {dimension_numbers = #tpu.dot_dimension_numbers<[1], [0], [0], [1], [0, 0, 1, 1], [], []>} : vector<32x32xbf16>, vector<32x128xbf16>, vector<32x128xf32> -> vector<32x128xf32>
    %63 = arith.addf %62, %3 : vector<32x128xf32>
    %cst_25 = arith.constant dense<0xFF800000> : vector<32xf32>
    %64 = vector.multi_reduction <maximumf>, %63, %cst_25 [1] : vector<32x128xf32> to vector<32xf32>
    %65 = vector.shape_cast %64 : vector<32xf32> to vector<32x1xf32>
    %66 = vector.broadcast %65 : vector<32x1xf32> to vector<32x128xf32>
    %67 = arith.subf %63, %66 : vector<32x128xf32>
    %68 = math.exp %67 : vector<32x128xf32>
    %69 = arith.truncf %68 : vector<32x128xf32> to vector<32x128xbf16>
    %cst_26 = arith.constant dense<0.000000e+00> : vector<32x32xf32>
    %70 = tpu.matmul %69, %61, %cst_26 {dimension_numbers = #tpu.dot_dimension_numbers<[1], [0], [0], [1], [0, 0, 1, 1], [], []>} : vector<32x128xbf16>, vector<128x32xbf16>, vector<32x32xf32> -> vector<32x32xf32>
    %cst_27 = arith.constant dense<0.000000e+00> : vector<32x32xf32>
    %71 = tpu.matmul %69, %6, %cst_27 {dimension_numbers = #tpu.dot_dimension_numbers<[1], [0], [0], [1], [0, 0, 1, 1], [], []>} : vector<32x128xbf16>, vector<128x32xbf16>, vector<32x32xf32> -> vector<32x32xf32>
    %72 = tpu.reciprocal %71 {approx = true} : vector<32x32xf32> -> vector<32x32xf32>
    %73 = arith.mulf %70, %72 : vector<32x32xf32>
    %74 = arith.truncf %73 : vector<32x32xf32> to vector<32x32xbf16>
    %c1_28 = arith.constant 1 : index
    %c0_29 = arith.constant 0 : index
    %c0_30 = arith.constant 0 : index
    %75 = vector.load %arg1[%c1_28, %c0_29, %c0_30] : memref<10x32x128xbf16, #tpu.memory_space<vmem>>, vector<1x32x32xbf16>
    %76 = vector.shape_cast %75 : vector<1x32x32xbf16> to vector<32x32xbf16>
    %cst_31 = arith.constant dense<0.000000e+00> : vector<32x32xf32>
    %77 = tpu.matmul %74, %76, %cst_31 {dimension_numbers = #tpu.dot_dimension_numbers<[1], [0], [0], [1], [0, 0, 1, 1], [], []>} : vector<32x32xbf16>, vector<32x32xbf16>, vector<32x32xf32> -> vector<32x32xf32>
    %c3 = arith.constant 3 : index
    %c0_32 = arith.constant 0 : index
    %78 = vector.load %arg3[%c3, %c0_32] : memref<55x128xf32, #tpu.memory_space<vmem>>, vector<1x32xf32>
    %79 = vector.broadcast %78 : vector<1x32xf32> to vector<32x32xf32>
    %80 = arith.addf %77, %79 : vector<32x32xf32>
    %81 = arith.addf %19, %80 : vector<32x32xf32>
    %c4 = arith.constant 4 : index
    %c0_33 = arith.constant 0 : index
    %82 = vector.load %arg3[%c4, %c0_33] : memref<55x128xf32, #tpu.memory_space<vmem>>, vector<1x32xf32>
    %c5 = arith.constant 5 : index
    %c0_34 = arith.constant 0 : index
    %83 = vector.load %arg3[%c5, %c0_34] : memref<55x128xf32, #tpu.memory_space<vmem>>, vector<1x32xf32>
    %cst_35 = arith.constant dense<0.000000e+00> : vector<32xf32>
    %84 = vector.multi_reduction <add>, %81, %cst_35 [1] : vector<32x32xf32> to vector<32xf32>
    %85 = vector.shape_cast %84 : vector<32xf32> to vector<32x1xf32>
    %cst_36 = arith.constant 3.200000e+01 : f32
    %86 = vector.broadcast %cst_36 : f32 to vector<32x1xf32>
    %87 = arith.divf %85, %86 : vector<32x1xf32>
    %88 = vector.broadcast %87 : vector<32x1xf32> to vector<32x32xf32>
    %89 = arith.subf %81, %88 : vector<32x32xf32>
    %90 = arith.mulf %89, %89 : vector<32x32xf32>
    %cst_37 = arith.constant dense<0.000000e+00> : vector<32xf32>
    %91 = vector.multi_reduction <add>, %90, %cst_37 [1] : vector<32x32xf32> to vector<32xf32>
    %92 = vector.shape_cast %91 : vector<32xf32> to vector<32x1xf32>
    %cst_38 = arith.constant 3.200000e+01 : f32
    %93 = vector.broadcast %cst_38 : f32 to vector<32x1xf32>
    %94 = arith.divf %92, %93 : vector<32x1xf32>
    %95 = vector.broadcast %87 : vector<32x1xf32> to vector<32x32xf32>
    %96 = arith.subf %81, %95 : vector<32x32xf32>
    %cst_39 = arith.constant 9.99999974E-6 : f32
    %97 = vector.broadcast %cst_39 : f32 to vector<32x1xf32>
    %98 = arith.addf %94, %97 : vector<32x1xf32>
    %99 = math.rsqrt %98 : vector<32x1xf32>
    %100 = vector.broadcast %99 : vector<32x1xf32> to vector<32x32xf32>
    %101 = arith.mulf %96, %100 : vector<32x32xf32>
    %102 = vector.broadcast %82 : vector<1x32xf32> to vector<32x32xf32>
    %103 = arith.mulf %101, %102 : vector<32x32xf32>
    %104 = vector.broadcast %83 : vector<1x32xf32> to vector<32x32xf32>
    %105 = arith.addf %103, %104 : vector<32x32xf32>
    %106 = arith.truncf %105 : vector<32x32xf32> to vector<32x32xbf16>
    %c2_40 = arith.constant 2 : index
    %c0_41 = arith.constant 0 : index
    %c0_42 = arith.constant 0 : index
    %107 = vector.load %arg1[%c2_40, %c0_41, %c0_42] : memref<10x32x128xbf16, #tpu.memory_space<vmem>>, vector<1x32x128xbf16>
    %108 = vector.shape_cast %107 : vector<1x32x128xbf16> to vector<32x128xbf16>
    %cst_43 = arith.constant dense<0.000000e+00> : vector<32x128xf32>
    %109 = tpu.matmul %106, %108, %cst_43 {dimension_numbers = #tpu.dot_dimension_numbers<[1], [0], [0], [1], [0, 0, 1, 1], [], []>} : vector<32x32xbf16>, vector<32x128xbf16>, vector<32x128xf32> -> vector<32x128xf32>
    %c6 = arith.constant 6 : index
    %c0_44 = arith.constant 0 : index
    %110 = vector.load %arg3[%c6, %c0_44] : memref<55x128xf32, #tpu.memory_space<vmem>>, vector<1x128xf32>
    %111 = vector.broadcast %110 : vector<1x128xf32> to vector<32x128xf32>
    %112 = arith.addf %109, %111 : vector<32x128xf32>
    %cst_45 = arith.constant 0.000000e+00 : f32
    %113 = vector.broadcast %cst_45 : f32 to vector<32x128xf32>
    %114 = arith.maximumf %112, %113 : vector<32x128xf32>
    %115 = arith.truncf %114 : vector<32x128xf32> to vector<32x128xbf16>
    %c0_46 = arith.constant 0 : index
    %c0_47 = arith.constant 0 : index
    %c0_48 = arith.constant 0 : index
    %116 = vector.load %arg2[%c0_46, %c0_47, %c0_48] : memref<3x128x32xbf16, #tpu.memory_space<vmem>>, vector<1x128x32xbf16>
    %117 = vector.shape_cast %116 : vector<1x128x32xbf16> to vector<128x32xbf16>
    %cst_49 = arith.constant dense<0.000000e+00> : vector<32x32xf32>
    %118 = tpu.matmul %115, %117, %cst_49 {dimension_numbers = #tpu.dot_dimension_numbers<[1], [0], [0], [1], [0, 0, 1, 1], [], []>} : vector<32x128xbf16>, vector<128x32xbf16>, vector<32x32xf32> -> vector<32x32xf32>
    %c7 = arith.constant 7 : index
    %c0_50 = arith.constant 0 : index
    %119 = vector.load %arg3[%c7, %c0_50] : memref<55x128xf32, #tpu.memory_space<vmem>>, vector<1x32xf32>
    %120 = vector.broadcast %119 : vector<1x32xf32> to vector<32x32xf32>
    %121 = arith.addf %118, %120 : vector<32x32xf32>
    %122 = arith.addf %81, %121 : vector<32x32xf32>
    %c8 = arith.constant 8 : index
    %c0_51 = arith.constant 0 : index
    %123 = vector.load %arg3[%c8, %c0_51] : memref<55x128xf32, #tpu.memory_space<vmem>>, vector<1x32xf32>
    %c9_52 = arith.constant 9 : index
    %c0_53 = arith.constant 0 : index
    %124 = vector.load %arg3[%c9_52, %c0_53] : memref<55x128xf32, #tpu.memory_space<vmem>>, vector<1x32xf32>
    %cst_54 = arith.constant dense<0.000000e+00> : vector<32xf32>
    %125 = vector.multi_reduction <add>, %122, %cst_54 [1] : vector<32x32xf32> to vector<32xf32>
    %126 = vector.shape_cast %125 : vector<32xf32> to vector<32x1xf32>
    %cst_55 = arith.constant 3.200000e+01 : f32
    %127 = vector.broadcast %cst_55 : f32 to vector<32x1xf32>
    %128 = arith.divf %126, %127 : vector<32x1xf32>
    %129 = vector.broadcast %128 : vector<32x1xf32> to vector<32x32xf32>
    %130 = arith.subf %122, %129 : vector<32x32xf32>
    %131 = arith.mulf %130, %130 : vector<32x32xf32>
    %cst_56 = arith.constant dense<0.000000e+00> : vector<32xf32>
    %132 = vector.multi_reduction <add>, %131, %cst_56 [1] : vector<32x32xf32> to vector<32xf32>
    %133 = vector.shape_cast %132 : vector<32xf32> to vector<32x1xf32>
    %cst_57 = arith.constant 3.200000e+01 : f32
    %134 = vector.broadcast %cst_57 : f32 to vector<32x1xf32>
    %135 = arith.divf %133, %134 : vector<32x1xf32>
    %136 = vector.broadcast %128 : vector<32x1xf32> to vector<32x32xf32>
    %137 = arith.subf %122, %136 : vector<32x32xf32>
    %cst_58 = arith.constant 9.99999974E-6 : f32
    %138 = vector.broadcast %cst_58 : f32 to vector<32x1xf32>
    %139 = arith.addf %135, %138 : vector<32x1xf32>
    %140 = math.rsqrt %139 : vector<32x1xf32>
    %141 = vector.broadcast %140 : vector<32x1xf32> to vector<32x32xf32>
    %142 = arith.mulf %137, %141 : vector<32x32xf32>
    %143 = vector.broadcast %123 : vector<1x32xf32> to vector<32x32xf32>
    %144 = arith.mulf %142, %143 : vector<32x32xf32>
    %145 = vector.broadcast %124 : vector<1x32xf32> to vector<32x32xf32>
    %146 = arith.addf %144, %145 : vector<32x32xf32>
    %147 = arith.truncf %146 : vector<32x32xf32> to vector<32x32xbf16>
    %c3_59 = arith.constant 3 : index
    %c0_60 = arith.constant 0 : index
    %c0_61 = arith.constant 0 : index
    %148 = vector.load %arg1[%c3_59, %c0_60, %c0_61] : memref<10x32x128xbf16, #tpu.memory_space<vmem>>, vector<1x32x96xbf16>
    %149 = vector.shape_cast %148 : vector<1x32x96xbf16> to vector<32x96xbf16>
    %cst_62 = arith.constant dense<0.000000e+00> : vector<32x96xf32>
    %150 = tpu.matmul %147, %149, %cst_62 {dimension_numbers = #tpu.dot_dimension_numbers<[1], [0], [0], [1], [0, 0, 1, 1], [], []>} : vector<32x32xbf16>, vector<32x96xbf16>, vector<32x96xf32> -> vector<32x96xf32>
    %c10 = arith.constant 10 : index
    %c0_63 = arith.constant 0 : index
    %151 = vector.load %arg3[%c10, %c0_63] : memref<55x128xf32, #tpu.memory_space<vmem>>, vector<1x96xf32>
    %152 = vector.broadcast %151 : vector<1x96xf32> to vector<32x96xf32>
    %153 = arith.addf %150, %152 : vector<32x96xf32>
    %154 = vector.extract_strided_slice %153 {offsets = [0, 0], sizes = [32, 32], strides = [1, 1]} : vector<32x96xf32> to vector<32x32xf32>
    %155 = arith.truncf %154 : vector<32x32xf32> to vector<32x32xbf16>
    %156 = vector.extract_strided_slice %153 {offsets = [0, 32], sizes = [32, 32], strides = [1, 1]} : vector<32x96xf32> to vector<32x32xf32>
    %157 = tpu.transpose %156, [1, 0] : vector<32x32xf32> -> vector<32x32xf32>
    %158 = tpu.concatenate %157, %157, %157, %157 in 1 : vector<32x32xf32>, vector<32x32xf32>, vector<32x32xf32>, vector<32x32xf32> -> vector<32x128xf32>
    %159 = arith.mulf %158, %1 : vector<32x128xf32>
    %160 = arith.truncf %159 : vector<32x128xf32> to vector<32x128xbf16>
    %161 = vector.extract_strided_slice %153 {offsets = [0, 64], sizes = [32, 32], strides = [1, 1]} : vector<32x96xf32> to vector<32x32xf32>
    %162 = tpu.concatenate %161, %161, %161, %161 in 0 : vector<32x32xf32>, vector<32x32xf32>, vector<32x32xf32>, vector<32x32xf32> -> vector<128x32xf32>
    %163 = arith.mulf %162, %7 : vector<128x32xf32>
    %164 = arith.truncf %163 : vector<128x32xf32> to vector<128x32xbf16>
    %cst_64 = arith.constant dense<0.000000e+00> : vector<32x128xf32>
    %165 = tpu.matmul %155, %160, %cst_64 {dimension_numbers = #tpu.dot_dimension_numbers<[1], [0], [0], [1], [0, 0, 1, 1], [], []>} : vector<32x32xbf16>, vector<32x128xbf16>, vector<32x128xf32> -> vector<32x128xf32>
    %166 = arith.addf %165, %3 : vector<32x128xf32>
    %cst_65 = arith.constant dense<0xFF800000> : vector<32xf32>
    %167 = vector.multi_reduction <maximumf>, %166, %cst_65 [1] : vector<32x128xf32> to vector<32xf32>
    %168 = vector.shape_cast %167 : vector<32xf32> to vector<32x1xf32>
    %169 = vector.broadcast %168 : vector<32x1xf32> to vector<32x128xf32>
    %170 = arith.subf %166, %169 : vector<32x128xf32>
    %171 = math.exp %170 : vector<32x128xf32>
    %172 = arith.truncf %171 : vector<32x128xf32> to vector<32x128xbf16>
    %cst_66 = arith.constant dense<0.000000e+00> : vector<32x32xf32>
    %173 = tpu.matmul %172, %164, %cst_66 {dimension_numbers = #tpu.dot_dimension_numbers<[1], [0], [0], [1], [0, 0, 1, 1], [], []>} : vector<32x128xbf16>, vector<128x32xbf16>, vector<32x32xf32> -> vector<32x32xf32>
    %cst_67 = arith.constant dense<0.000000e+00> : vector<32x32xf32>
    %174 = tpu.matmul %172, %6, %cst_67 {dimension_numbers = #tpu.dot_dimension_numbers<[1], [0], [0], [1], [0, 0, 1, 1], [], []>} : vector<32x128xbf16>, vector<128x32xbf16>, vector<32x32xf32> -> vector<32x32xf32>
    %175 = tpu.reciprocal %174 {approx = true} : vector<32x32xf32> -> vector<32x32xf32>
    %176 = arith.mulf %173, %175 : vector<32x32xf32>
    %177 = arith.truncf %176 : vector<32x32xf32> to vector<32x32xbf16>
    %c4_68 = arith.constant 4 : index
    %c0_69 = arith.constant 0 : index
    %c0_70 = arith.constant 0 : index
    %178 = vector.load %arg1[%c4_68, %c0_69, %c0_70] : memref<10x32x128xbf16, #tpu.memory_space<vmem>>, vector<1x32x32xbf16>
    %179 = vector.shape_cast %178 : vector<1x32x32xbf16> to vector<32x32xbf16>
    %cst_71 = arith.constant dense<0.000000e+00> : vector<32x32xf32>
    %180 = tpu.matmul %177, %179, %cst_71 {dimension_numbers = #tpu.dot_dimension_numbers<[1], [0], [0], [1], [0, 0, 1, 1], [], []>} : vector<32x32xbf16>, vector<32x32xbf16>, vector<32x32xf32> -> vector<32x32xf32>
    %c11 = arith.constant 11 : index
    %c0_72 = arith.constant 0 : index
    %181 = vector.load %arg3[%c11, %c0_72] : memref<55x128xf32, #tpu.memory_space<vmem>>, vector<1x32xf32>
    %182 = vector.broadcast %181 : vector<1x32xf32> to vector<32x32xf32>
    %183 = arith.addf %180, %182 : vector<32x32xf32>
    %184 = arith.addf %122, %183 : vector<32x32xf32>
    %c12 = arith.constant 12 : index
    %c0_73 = arith.constant 0 : index
    %185 = vector.load %arg3[%c12, %c0_73] : memref<55x128xf32, #tpu.memory_space<vmem>>, vector<1x32xf32>
    %c13 = arith.constant 13 : index
    %c0_74 = arith.constant 0 : index
    %186 = vector.load %arg3[%c13, %c0_74] : memref<55x128xf32, #tpu.memory_space<vmem>>, vector<1x32xf32>
    %cst_75 = arith.constant dense<0.000000e+00> : vector<32xf32>
    %187 = vector.multi_reduction <add>, %184, %cst_75 [1] : vector<32x32xf32> to vector<32xf32>
    %188 = vector.shape_cast %187 : vector<32xf32> to vector<32x1xf32>
    %cst_76 = arith.constant 3.200000e+01 : f32
    %189 = vector.broadcast %cst_76 : f32 to vector<32x1xf32>
    %190 = arith.divf %188, %189 : vector<32x1xf32>
    %191 = vector.broadcast %190 : vector<32x1xf32> to vector<32x32xf32>
    %192 = arith.subf %184, %191 : vector<32x32xf32>
    %193 = arith.mulf %192, %192 : vector<32x32xf32>
    %cst_77 = arith.constant dense<0.000000e+00> : vector<32xf32>
    %194 = vector.multi_reduction <add>, %193, %cst_77 [1] : vector<32x32xf32> to vector<32xf32>
    %195 = vector.shape_cast %194 : vector<32xf32> to vector<32x1xf32>
    %cst_78 = arith.constant 3.200000e+01 : f32
    %196 = vector.broadcast %cst_78 : f32 to vector<32x1xf32>
    %197 = arith.divf %195, %196 : vector<32x1xf32>
    %198 = vector.broadcast %190 : vector<32x1xf32> to vector<32x32xf32>
    %199 = arith.subf %184, %198 : vector<32x32xf32>
    %cst_79 = arith.constant 9.99999974E-6 : f32
    %200 = vector.broadcast %cst_79 : f32 to vector<32x1xf32>
    %201 = arith.addf %197, %200 : vector<32x1xf32>
    %202 = math.rsqrt %201 : vector<32x1xf32>
    %203 = vector.broadcast %202 : vector<32x1xf32> to vector<32x32xf32>
    %204 = arith.mulf %199, %203 : vector<32x32xf32>
    %205 = vector.broadcast %185 : vector<1x32xf32> to vector<32x32xf32>
    %206 = arith.mulf %204, %205 : vector<32x32xf32>
    %207 = vector.broadcast %186 : vector<1x32xf32> to vector<32x32xf32>
    %208 = arith.addf %206, %207 : vector<32x32xf32>
    %209 = arith.truncf %208 : vector<32x32xf32> to vector<32x32xbf16>
    %c5_80 = arith.constant 5 : index
    %c0_81 = arith.constant 0 : index
    %c0_82 = arith.constant 0 : index
    %210 = vector.load %arg1[%c5_80, %c0_81, %c0_82] : memref<10x32x128xbf16, #tpu.memory_space<vmem>>, vector<1x32x128xbf16>
    %211 = vector.shape_cast %210 : vector<1x32x128xbf16> to vector<32x128xbf16>
    %cst_83 = arith.constant dense<0.000000e+00> : vector<32x128xf32>
    %212 = tpu.matmul %209, %211, %cst_83 {dimension_numbers = #tpu.dot_dimension_numbers<[1], [0], [0], [1], [0, 0, 1, 1], [], []>} : vector<32x32xbf16>, vector<32x128xbf16>, vector<32x128xf32> -> vector<32x128xf32>
    %c14 = arith.constant 14 : index
    %c0_84 = arith.constant 0 : index
    %213 = vector.load %arg3[%c14, %c0_84] : memref<55x128xf32, #tpu.memory_space<vmem>>, vector<1x128xf32>
    %214 = vector.broadcast %213 : vector<1x128xf32> to vector<32x128xf32>
    %215 = arith.addf %212, %214 : vector<32x128xf32>
    %cst_85 = arith.constant 0.000000e+00 : f32
    %216 = vector.broadcast %cst_85 : f32 to vector<32x128xf32>
    %217 = arith.maximumf %215, %216 : vector<32x128xf32>
    %218 = arith.truncf %217 : vector<32x128xf32> to vector<32x128xbf16>
    %c1_86 = arith.constant 1 : index
    %c0_87 = arith.constant 0 : index
    %c0_88 = arith.constant 0 : index
    %219 = vector.load %arg2[%c1_86, %c0_87, %c0_88] : memref<3x128x32xbf16, #tpu.memory_space<vmem>>, vector<1x128x32xbf16>
    %220 = vector.shape_cast %219 : vector<1x128x32xbf16> to vector<128x32xbf16>
    %cst_89 = arith.constant dense<0.000000e+00> : vector<32x32xf32>
    %221 = tpu.matmul %218, %220, %cst_89 {dimension_numbers = #tpu.dot_dimension_numbers<[1], [0], [0], [1], [0, 0, 1, 1], [], []>} : vector<32x128xbf16>, vector<128x32xbf16>, vector<32x32xf32> -> vector<32x32xf32>
    %c15 = arith.constant 15 : index
    %c0_90 = arith.constant 0 : index
    %222 = vector.load %arg3[%c15, %c0_90] : memref<55x128xf32, #tpu.memory_space<vmem>>, vector<1x32xf32>
    %223 = vector.broadcast %222 : vector<1x32xf32> to vector<32x32xf32>
    %224 = arith.addf %221, %223 : vector<32x32xf32>
    %225 = arith.addf %184, %224 : vector<32x32xf32>
    %226 = arith.truncf %225 : vector<32x32xf32> to vector<32x32xbf16>
    %cst_91 = arith.constant dense<0.000000e+00> : vector<8x32xf32>
    %227 = tpu.matmul %4, %226, %cst_91 {dimension_numbers = #tpu.dot_dimension_numbers<[1], [0], [0], [1], [0, 0, 1, 1], [], []>} : vector<8x32xbf16>, vector<32x32xbf16>, vector<8x32xf32> -> vector<8x32xf32>
    %228 = arith.truncf %227 : vector<8x32xf32> to vector<8x32xbf16>
    %c6_92 = arith.constant 6 : index
    %c0_93 = arith.constant 0 : index
    %c0_94 = arith.constant 0 : index
    %229 = vector.load %arg1[%c6_92, %c0_93, %c0_94] : memref<10x32x128xbf16, #tpu.memory_space<vmem>>, vector<1x32x32xbf16>
    %230 = vector.shape_cast %229 : vector<1x32x32xbf16> to vector<32x32xbf16>
    %cst_95 = arith.constant dense<0.000000e+00> : vector<8x32xf32>
    %231 = tpu.matmul %228, %230, %cst_95 {dimension_numbers = #tpu.dot_dimension_numbers<[1], [0], [0], [1], [0, 0, 1, 1], [], []>} : vector<8x32xbf16>, vector<32x32xbf16>, vector<8x32xf32> -> vector<8x32xf32>
    %c16 = arith.constant 16 : index
    %c0_96 = arith.constant 0 : index
    %232 = vector.load %arg3[%c16, %c0_96] : memref<55x128xf32, #tpu.memory_space<vmem>>, vector<1x32xf32>
    %233 = vector.broadcast %232 : vector<1x32xf32> to vector<8x32xf32>
    %234 = arith.addf %231, %233 : vector<8x32xf32>
    %c17 = arith.constant 17 : index
    %c0_97 = arith.constant 0 : index
    %235 = vector.load %arg3[%c17, %c0_97] : memref<55x128xf32, #tpu.memory_space<vmem>>, vector<1x32xf32>
    %c18 = arith.constant 18 : index
    %c0_98 = arith.constant 0 : index
    %236 = vector.load %arg3[%c18, %c0_98] : memref<55x128xf32, #tpu.memory_space<vmem>>, vector<1x32xf32>
    %cst_99 = arith.constant dense<0.000000e+00> : vector<8xf32>
    %237 = vector.multi_reduction <add>, %234, %cst_99 [1] : vector<8x32xf32> to vector<8xf32>
    %238 = vector.shape_cast %237 : vector<8xf32> to vector<8x1xf32>
    %cst_100 = arith.constant 3.200000e+01 : f32
    %239 = vector.broadcast %cst_100 : f32 to vector<8x1xf32>
    %240 = arith.divf %238, %239 : vector<8x1xf32>
    %241 = vector.broadcast %240 : vector<8x1xf32> to vector<8x32xf32>
    %242 = arith.subf %234, %241 : vector<8x32xf32>
    %243 = arith.mulf %242, %242 : vector<8x32xf32>
    %cst_101 = arith.constant dense<0.000000e+00> : vector<8xf32>
    %244 = vector.multi_reduction <add>, %243, %cst_101 [1] : vector<8x32xf32> to vector<8xf32>
    %245 = vector.shape_cast %244 : vector<8xf32> to vector<8x1xf32>
    %cst_102 = arith.constant 3.200000e+01 : f32
    %246 = vector.broadcast %cst_102 : f32 to vector<8x1xf32>
    %247 = arith.divf %245, %246 : vector<8x1xf32>
    %248 = vector.broadcast %240 : vector<8x1xf32> to vector<8x32xf32>
    %249 = arith.subf %234, %248 : vector<8x32xf32>
    %cst_103 = arith.constant 9.99999974E-6 : f32
    %250 = vector.broadcast %cst_103 : f32 to vector<8x1xf32>
    %251 = arith.addf %247, %250 : vector<8x1xf32>
    %252 = math.rsqrt %251 : vector<8x1xf32>
    %253 = vector.broadcast %252 : vector<8x1xf32> to vector<8x32xf32>
    %254 = arith.mulf %249, %253 : vector<8x32xf32>
    %255 = vector.broadcast %235 : vector<1x32xf32> to vector<8x32xf32>
    %256 = arith.mulf %254, %255 : vector<8x32xf32>
    %257 = vector.broadcast %236 : vector<1x32xf32> to vector<8x32xf32>
    %258 = arith.addf %256, %257 : vector<8x32xf32>
    %cst_104 = arith.constant 5.000000e-01 : f32
    %259 = vector.broadcast %cst_104 : f32 to vector<8x32xf32>
    %260 = arith.mulf %259, %258 : vector<8x32xf32>
    %cst_105 = arith.constant 0.707106769 : f32
    %261 = vector.broadcast %cst_105 : f32 to vector<8x32xf32>
    %262 = arith.mulf %258, %261 : vector<8x32xf32>
    %263 = math.erf %262 : vector<8x32xf32>
    %cst_106 = arith.constant 1.000000e+00 : f32
    %264 = vector.broadcast %cst_106 : f32 to vector<8x32xf32>
    %265 = arith.addf %264, %263 : vector<8x32xf32>
    %266 = arith.mulf %260, %265 : vector<8x32xf32>
    %267 = arith.truncf %266 : vector<8x32xf32> to vector<8x32xbf16>
    %c7_107 = arith.constant 7 : index
    %c0_108 = arith.constant 0 : index
    %c0_109 = arith.constant 0 : index
    %268 = vector.load %arg1[%c7_107, %c0_108, %c0_109] : memref<10x32x128xbf16, #tpu.memory_space<vmem>>, vector<1x32x32xbf16>
    %269 = vector.shape_cast %268 : vector<1x32x32xbf16> to vector<32x32xbf16>
    %cst_110 = arith.constant dense<0.000000e+00> : vector<8x32xf32>
    %270 = tpu.matmul %267, %269, %cst_110 {dimension_numbers = #tpu.dot_dimension_numbers<[1], [0], [0], [1], [0, 0, 1, 1], [], []>} : vector<8x32xbf16>, vector<32x32xbf16>, vector<8x32xf32> -> vector<8x32xf32>
    %c19 = arith.constant 19 : index
    %c0_111 = arith.constant 0 : index
    %271 = vector.load %arg3[%c19, %c0_111] : memref<55x128xf32, #tpu.memory_space<vmem>>, vector<1x32xf32>
    %272 = vector.broadcast %271 : vector<1x32xf32> to vector<8x32xf32>
    %273 = arith.addf %270, %272 : vector<8x32xf32>
    %c20 = arith.constant 20 : index
    %c0_112 = arith.constant 0 : index
    %274 = vector.load %arg3[%c20, %c0_112] : memref<55x128xf32, #tpu.memory_space<vmem>>, vector<1x32xf32>
    %c21 = arith.constant 21 : index
    %c0_113 = arith.constant 0 : index
    %275 = vector.load %arg3[%c21, %c0_113] : memref<55x128xf32, #tpu.memory_space<vmem>>, vector<1x32xf32>
    %cst_114 = arith.constant dense<0.000000e+00> : vector<8xf32>
    %276 = vector.multi_reduction <add>, %273, %cst_114 [1] : vector<8x32xf32> to vector<8xf32>
    %277 = vector.shape_cast %276 : vector<8xf32> to vector<8x1xf32>
    %cst_115 = arith.constant 3.200000e+01 : f32
    %278 = vector.broadcast %cst_115 : f32 to vector<8x1xf32>
    %279 = arith.divf %277, %278 : vector<8x1xf32>
    %280 = vector.broadcast %279 : vector<8x1xf32> to vector<8x32xf32>
    %281 = arith.subf %273, %280 : vector<8x32xf32>
    %282 = arith.mulf %281, %281 : vector<8x32xf32>
    %cst_116 = arith.constant dense<0.000000e+00> : vector<8xf32>
    %283 = vector.multi_reduction <add>, %282, %cst_116 [1] : vector<8x32xf32> to vector<8xf32>
    %284 = vector.shape_cast %283 : vector<8xf32> to vector<8x1xf32>
    %cst_117 = arith.constant 3.200000e+01 : f32
    %285 = vector.broadcast %cst_117 : f32 to vector<8x1xf32>
    %286 = arith.divf %284, %285 : vector<8x1xf32>
    %287 = vector.broadcast %279 : vector<8x1xf32> to vector<8x32xf32>
    %288 = arith.subf %273, %287 : vector<8x32xf32>
    %cst_118 = arith.constant 9.99999974E-6 : f32
    %289 = vector.broadcast %cst_118 : f32 to vector<8x1xf32>
    %290 = arith.addf %286, %289 : vector<8x1xf32>
    %291 = math.rsqrt %290 : vector<8x1xf32>
    %292 = vector.broadcast %291 : vector<8x1xf32> to vector<8x32xf32>
    %293 = arith.mulf %288, %292 : vector<8x32xf32>
    %294 = vector.broadcast %274 : vector<1x32xf32> to vector<8x32xf32>
    %295 = arith.mulf %293, %294 : vector<8x32xf32>
    %296 = vector.broadcast %275 : vector<1x32xf32> to vector<8x32xf32>
    %297 = arith.addf %295, %296 : vector<8x32xf32>
    %cst_119 = arith.constant 5.000000e-01 : f32
    %298 = vector.broadcast %cst_119 : f32 to vector<8x32xf32>
    %299 = arith.mulf %298, %297 : vector<8x32xf32>
    %cst_120 = arith.constant 0.707106769 : f32
    %300 = vector.broadcast %cst_120 : f32 to vector<8x32xf32>
    %301 = arith.mulf %297, %300 : vector<8x32xf32>
    %302 = math.erf %301 : vector<8x32xf32>
    %cst_121 = arith.constant 1.000000e+00 : f32
    %303 = vector.broadcast %cst_121 : f32 to vector<8x32xf32>
    %304 = arith.addf %303, %302 : vector<8x32xf32>
    %305 = arith.mulf %299, %304 : vector<8x32xf32>
    %306 = arith.truncf %305 : vector<8x32xf32> to vector<8x32xbf16>
    %c8_122 = arith.constant 8 : index
    %c0_123 = arith.constant 0 : index
    %c0_124 = arith.constant 0 : index
    %307 = vector.load %arg1[%c8_122, %c0_123, %c0_124] : memref<10x32x128xbf16, #tpu.memory_space<vmem>>, vector<1x32x128xbf16>
    %308 = vector.shape_cast %307 : vector<1x32x128xbf16> to vector<32x128xbf16>
    %cst_125 = arith.constant dense<0.000000e+00> : vector<8x128xf32>
    %309 = tpu.matmul %306, %308, %cst_125 {dimension_numbers = #tpu.dot_dimension_numbers<[1], [0], [0], [1], [0, 0, 1, 1], [], []>} : vector<8x32xbf16>, vector<32x128xbf16>, vector<8x128xf32> -> vector<8x128xf32>
    %c22 = arith.constant 22 : index
    %c0_126 = arith.constant 0 : index
    %310 = vector.load %arg3[%c22, %c0_126] : memref<55x128xf32, #tpu.memory_space<vmem>>, vector<1x128xf32>
    %311 = vector.broadcast %310 : vector<1x128xf32> to vector<8x128xf32>
    %312 = arith.addf %309, %311 : vector<8x128xf32>
    %c0_127 = arith.constant 0 : index
    %c0_128 = arith.constant 0 : index
    %313 = vector.load %arg5[%c0_127, %c0_128] : memref<8x128xf32, #tpu.memory_space<vmem>>, vector<8x128xf32>
    tpu.vector_store %arg5[%c0_127, %c0_128], %312 {strides = array<i32>} : memref<8x128xf32, #tpu.memory_space<vmem>>, vector<8x128xf32>,
    return
  }
}

</mosaic_0001>

<llo_original>
// kernel: conv_transformer_policy.1
$region0: #{conv_transformer_policy.1}
  #allocation0 [shape = 'u32[]', space=smem, size = 0x4, offset = 0x4, fixed_abs, tag = 'smem constant byte address 0x4 - core index']
  #allocation1 [shape = 'u32[144,128]{1,0:T(1,128)}', space=vmem, size = 0x12000, scoped, tag = 'internal scratch']
  %s0 = inlined_call_operand.vmem [shape: s32[32,1], index: 0, kind: input, shape index: {}]
  %s1 = inlined_call_operand.vmem [shape: bf16[10,32,128], index: 1, kind: input, shape index: {}]
  %s2 = inlined_call_operand.vmem [shape: bf16[3,128,32], index: 2, kind: input, shape index: {}]
  %s3 = inlined_call_operand.vmem [shape: f32[55,128], index: 3, kind: input, shape index: {}]
  %s4 = inlined_call_operand.vmem [shape: bf16[72,128], index: 4, kind: input, shape index: {}]
  %s5 = inlined_call_operand.vmem [shape: f32[8,128], index: 5, kind: output, shape index: {}]
  %s6 = sld [smem:[#allocation0]]
  $region30: #{conv_transformer_policy.1} parent=0
    _
  %s8 = ssub.s32 1, %s6
  %s9 = scalar_select 0, %s8, %s6
  // Predicated region
  $region2: #{conv_transformer_policy.1} parent=0 // pred_check
    _
  $region3: #{conv_transformer_policy.1} parent=0 // pred_check_branch
    %11 = sbr.rel (0) target = $region5
  $region4: #{conv_transformer_policy.1} parent=0 // pred_region
    _
  $region5: #{conv_transformer_policy.1} parent=0 // pred_fallthru
    _
  // Predicated region
  $region6: #{conv_transformer_policy.1} parent=0 // pred_check
    _
  $region7: #{conv_transformer_policy.1} parent=0 // pred_check_branch
    %13 = sbr.rel (0) target = $region9
  $region8: #{conv_transformer_policy.1} parent=0 // pred_region
    _
  $region9: #{conv_transformer_policy.1} parent=0 // pred_fallthru
    _
  // Predicated region
  $region10: #{conv_transformer_policy.1} parent=0 // pred_check
    _
  $region11: #{conv_transformer_policy.1} parent=0 // pred_check_branch
    %15 = sbr.rel (0) target = $region13
  $region12: #{conv_transformer_policy.1} parent=0 // pred_region
    _
  $region13: #{conv_transformer_policy.1} parent=0 // pred_fallthru
    _
  // Predicated region
  $region14: #{conv_transformer_policy.1} parent=0 // pred_check
    _
  $region15: #{conv_transformer_policy.1} parent=0 // pred_check_branch
    %17 = sbr.rel (0) target = $region17
  $region16: #{conv_transformer_policy.1} parent=0 // pred_region
    _
  $region17: #{conv_transformer_policy.1} parent=0 // pred_fallthru
    _
  // Predicated region
  $region18: #{conv_transformer_policy.1} parent=0 // pred_check
    _
  $region19: #{conv_transformer_policy.1} parent=0 // pred_check_branch
    %19 = sbr.rel (0) target = $region21
  $region20: #{conv_transformer_policy.1} parent=0 // pred_region
    _
  $region21: #{conv_transformer_policy.1} parent=0 // pred_fallthru
    _
  %v21 = vld [vmem:[%s4] sm:$0xf]
  %v22 = vld [vmem:[%s4 + $0x4] sm:$0xf]
  %v23 = vld [vmem:[%s4 + $0x8] sm:$0xf]
  %v24 = vld [vmem:[%s4 + $0xc] sm:$0xf]
  %v25 = vunpack.c.l.bf16 %v21
  %v26 = vunpack.c.l.bf16 %v22
  %v27 = vunpack.c.l.bf16 %v23
  %v28 = vunpack.c.l.bf16 %v24
  %v29 = vld [vmem:[%s4 + $0x10] sm:$0xf]
  %v30 = vld [vmem:[%s4 + $0x14] sm:$0xf]
  %v31 = vld [vmem:[%s4 + $0x18] sm:$0xf]
  %v32 = vld [vmem:[%s4 + $0x1c] sm:$0xf]
  %v33 = vunpack.c.l.bf16 %v29
  %v34 = vunpack.c.l.bf16 %v30
  %v35 = vunpack.c.l.bf16 %v31
  %v36 = vunpack.c.l.bf16 %v32
  %v37 = vld [vmem:[%s4 + $0x20] sm:$0xf]
  %s38 = scalar_lea.vmem %s2, 128
  %v39 = vld [vmem:[%s38] sm:$0xf]
  %v40 = vld [vmem:[%s38 + $0x4] sm:$0xf]
  %v41 = vld [vmem:[%s38 + $0x8] sm:$0xf]
  %v42 = vld [vmem:[%s38 + $0xc] sm:$0xf]
  %v43 = vld [vmem:[%s38 + $0x10] sm:$0xf]
  %v44 = vld [vmem:[%s38 + $0x14] sm:$0xf]
  %v45 = vld [vmem:[%s38 + $0x18] sm:$0xf]
  %v46 = vld [vmem:[%s38 + $0x1c] sm:$0xf]
  %v47 = vld [vmem:[%s38 + $0x20] sm:$0xf]
  %v48 = vld [vmem:[%s38 + $0x24] sm:$0xf]
  %v49 = vld [vmem:[%s38 + $0x28] sm:$0xf]
  %v50 = vld [vmem:[%s38 + $0x2c] sm:$0xf]
  %v51 = vld [vmem:[%s38 + $0x30] sm:$0xf]
  %v52 = vld [vmem:[%s38 + $0x34] sm:$0xf]
  %v53 = vld [vmem:[%s38 + $0x38] sm:$0xf]
  %v54 = vld [vmem:[%s38 + $0x3c] sm:$0xf]
  %v55 = vunpack.c.l.bf16 %v39
  %v56 = vunpack.c.l.bf16 %v40
  %v57 = vunpack.c.l.bf16 %v41
  %v58 = vunpack.c.l.bf16 %v42
  %v59 = vunpack.c.l.bf16 %v43
  %v60 = vunpack.c.l.bf16 %v44
  %v61 = vunpack.c.l.bf16 %v45
  %v62 = vunpack.c.l.bf16 %v46
  %v63 = vunpack.c.l.bf16 %v47
  %v64 = vunpack.c.l.bf16 %v48
  %v65 = vunpack.c.l.bf16 %v49
  %v66 = vunpack.c.l.bf16 %v50
  %v67 = vunpack.c.l.bf16 %v51
  %v68 = vunpack.c.l.bf16 %v52
  %v69 = vunpack.c.l.bf16 %v53
  %v70 = vunpack.c.l.bf16 %v54
  %v71 = vld [vmem:[%s3 + $0x17] sm:$0xff]
  %v72 = vld [vmem:[%s3 + $0x1f] sm:$0xff]
  %v73 = vld [vmem:[%s3 + $0x27] sm:$0xff]
  %v74 = vld [vmem:[%s3 + $0x2f] sm:$0xff]
  %v75 = vld [vmem:[%s0] sm:$0xff]
  %v76 = vld [vmem:[%s0 + $0x8] sm:$0xff]
  %v77 = vld [vmem:[%s0 + $0x10] sm:$0xff]
  %v78 = vld [vmem:[%s0 + $0x18] sm:$0xff]
  %v79 = vlaneseq
  %v80 = vand.u32 %v79, 127
  %81 = vset.pattern.permute.xlu0 0
  %82 = vperm.xlu0 %81, %v75
  %v83 = vpop.permute.xlu0 %82
  %84 = vset.pattern.permute.xlu0 0
  %85 = vperm.xlu0 %84, %v76
  %v86 = vpop.permute.xlu0 %85
  %87 = vset.pattern.permute.xlu0 0
  %88 = vperm.xlu0 %87, %v77
  %v89 = vpop.permute.xlu0 %88
  %90 = vset.pattern.permute.xlu0 0
  %91 = vperm.xlu0 %90, %v78
  %v92 = vpop.permute.xlu0 %91
  %vm93 = vcmp.eq.s32.totalorder %v83, %v80
  %vm94 = vcmp.eq.s32.totalorder %v86, %v80
  %vm95 = vcmp.eq.s32.totalorder %v89, %v80
  %vm96 = vcmp.eq.s32.totalorder %v92, %v80
  %v97 = vsel %vm93, 1, 0
  %v98 = vsel %vm94, 1, 0
  %v99 = vsel %vm95, 1, 0
  %v100 = vsel %vm96, 1, 0
  %v101 = vcvt.s32.f32 %v97
  %v102 = vcvt.s32.f32 %v98
  %v103 = vcvt.s32.f32 %v99
  %v104 = vcvt.s32.f32 %v100
  %v105 = vpack.c.bf16 %v102, %v101
  %v106 = vpack.c.bf16 %v104, %v103
  %s107 = scalar_lea.vmem %s1, 144
  %v108 = vld [vmem:[%s107] sm:$0xf]
  %v109 = vld [vmem:[%s107 + $0x4] sm:$0xf]
  %v112 = vunpack.c.l.b16 %v108
  %v113 = vunpack.c.l.b16 %v109
  %v114 = vpack.c.b16 %v113, %v112
  %vm116 = vcmask 130048
  %v118 = vsel %vm116, %v105, 0
  %v121 = vsel %vm116, %v106, 0
  %123 = vmatprep.subr.bf16.mxu0 0
  %124 = vmatpush1.bf16.msra.mxu0 %v114
  %125 = vmatprep.subr.bf16.mxu0 0
  %126 = vmatpush1.bf16.msra.mxu0 0
  %127 = vmatprep.subr.bf16.mxu0 0
  %128 = vmatpush1.bf16.msra.mxu0 0
  %129 = vmatprep.subr.bf16.mxu0 0
  %130 = vmatpush1.bf16.msra.mxu0 0
  %131 = vmatprep.subr.bf16.mxu0 0
  %132 = vmatpush1.bf16.msra.mxu0 0
  %133 = vmatprep.subr.bf16.mxu0 0
  %134 = vmatpush1.bf16.msra.mxu0 0
  %135 = vmatprep.subr.bf16.mxu0 0
  %136 = vmatpush1.bf16.msra.mxu0 0
  %137 = vmatprep.subr.bf16.mxu0 0
  %138 = vmatpush1.bf16.msra.mxu0 0
  %139 = vmatprep.subr.bf16.mxu0 0
  %140 = vmatpush1.bf16.msra.mxu0 0
  %141 = vmatprep.subr.bf16.mxu0 0
  %142 = vmatpush1.bf16.msra.mxu0 0
  %143 = vmatprep.subr.bf16.mxu0 0
  %144 = vmatpush1.bf16.msra.mxu0 0
  %145 = vmatprep.subr.bf16.mxu0 0
  %146 = vmatpush1.bf16.msra.mxu0 0
  %147 = vmatprep.subr.bf16.mxu0 0
  %148 = vmatpush1.bf16.msra.mxu0 0
  %149 = vmatprep.subr.bf16.mxu0 0
  %150 = vmatpush1.bf16.msra.mxu0 0
  %151 = vmatprep.subr.bf16.mxu0 0
  %152 = vmatpush1.bf16.msra.mxu0 0
  %153 = vmatprep.subr.bf16.mxu0 0
  %154 = vmatpush1.bf16.msra.mxu0 0
  %155 = vmatprep.mubr.bf16.mxu0 0
  %156 = vmatmul.mubr.bf16.gmra.mrb[0].mxu0 %v118
  %v157 = vpop.f32.mrb[0].mxu0
  %v158 = vadd.f32 %v71, %v157
  %v159 = vpop.f32.mrb[0].mxu0
  %v160 = vpop.f32.mrb[0].mxu0
  %v161 = vadd.f32 %v72, %v160
  %v162 = vpop.f32.mrb[0].mxu0
  %163 = vmatprep.mubr.bf16.mxu0 0
  %164 = vmatmul.mubr.bf16.gmra.mrb[0].mxu0 %v121
  %v165 = vpop.f32.mrb[0].mxu0
  %v166 = vadd.f32 %v73, %v165
  %v167 = vpop.f32.mrb[0].mxu0
  %v168 = vpop.f32.mrb[0].mxu0
  %v169 = vadd.f32 %v74, %v168
  %v170 = vpop.f32.mrb[0].mxu0
  %171 = vdwg.mxu0
  %v172 = vld [vmem:[%s3] sm:$0x1]
  %v173 = vld [vmem:[%s3 + $0x1] sm:$0x1]
  %vm174 = vcmask 261120
  %v175 = vsel %vm174, %v158, 0.0
  %176 = vadd.xlane.f32.xlu0 %v175
  %v177 = vpop.xlane.xlu0 %176
  %v178 = vsel %vm174, %v161, 0.0
  %179 = vadd.xlane.f32.xlu0 %v178
  %v180 = vpop.xlane.xlu0 %179
  %v181 = vsel %vm174, %v166, 0.0
  %182 = vadd.xlane.f32.xlu0 %v181
  %v183 = vpop.xlane.xlu0 %182
  %v184 = vsel %vm174, %v169, 0.0
  %185 = vadd.xlane.f32.xlu0 %v184
  %v186 = vpop.xlane.xlu0 %185
  %v187 = vrcp.pop 32.0
  %v188 = vmul.f32 %v177, %v187
  %v189 = vmul.f32 %v180, %v187
  %v190 = vmul.f32 %v183, %v187
  %v191 = vmul.f32 %v186, %v187
  %v192 = vsub.f32 %v158, %v188
  %v193 = vsub.f32 %v161, %v189
  %v194 = vsub.f32 %v166, %v190
  %v195 = vsub.f32 %v169, %v191
  %v196 = vmul.f32 %v192, %v192
  %v197 = vmul.f32 %v193, %v193
  %v198 = vmul.f32 %v194, %v194
  %v199 = vmul.f32 %v195, %v195
  %v200 = vsel %vm174, %v196, 0.0
  %201 = vadd.xlane.f32.xlu0 %v200
  %v202 = vpop.xlane.xlu0 %201
  %v203 = vsel %vm174, %v197, 0.0
  %204 = vadd.xlane.f32.xlu0 %v203
  %v205 = vpop.xlane.xlu0 %204
  %v206 = vsel %vm174, %v198, 0.0
  %207 = vadd.xlane.f32.xlu0 %v206
  %v208 = vpop.xlane.xlu0 %207
  %v209 = vsel %vm174, %v199, 0.0
  %210 = vadd.xlane.f32.xlu0 %v209
  %v211 = vpop.xlane.xlu0 %210
  %v212 = vmul.f32 %v202, %v187
  %v213 = vmul.f32 %v205, %v187
  %v214 = vmul.f32 %v208, %v187
  %v215 = vmul.f32 %v211, %v187
  %v216 = vadd.f32 %v212, 1e-05
  %v217 = vadd.f32 %v213, 1e-05
  %v218 = vadd.f32 %v214, 1e-05
  %v219 = vadd.f32 %v215, 1e-05
  %v220 = vrsqrt.pop %v216
  %v221 = vrsqrt.pop %v217
  %v222 = vrsqrt.pop %v218
  %v223 = vrsqrt.pop %v219
  %v224 = vmul.f32 %v192, %v220
  %v225 = vmul.f32 %v193, %v221
  %v226 = vmul.f32 %v194, %v222
  %v227 = vmul.f32 %v195, %v223
  %v228 = vlaneseq
  %v229 = vshrl.u32 %v228, 7
  %v230 = vsub.s32 0, %v229
  %v231 = vrot.slane %v172, %v230
  %v232 = vmul.f32 %v224, %v231
  %v233 = vmul.f32 %v225, %v231
  %v234 = vmul.f32 %v226, %v231
  %v235 = vmul.f32 %v227, %v231
  %v236 = vlaneseq
  %v237 = vshrl.u32 %v236, 7
  %v238 = vsub.s32 0, %v237
  %v239 = vrot.slane %v173, %v238
  %v240 = vadd.f32 %v232, %v239
  %v241 = vadd.f32 %v233, %v239
  %v242 = vadd.f32 %v234, %v239
  %v243 = vadd.f32 %v235, %v239
  %v244 = vpack.c.bf16 %v241, %v240
  %v245 = vpack.c.bf16 %v243, %v242
  %v246 = vld [vmem:[%s1] sm:$0xf]
  %v247 = vld [vmem:[%s1 + $0x4] sm:$0xf]
  %v248 = vld [vmem:[%s1 + $0x8] sm:$0xf]
  %v249 = vld [vmem:[%s1 + $0xc] sm:$0xf]
  %v250 = vld [vmem:[%s3 + $0x2] sm:$0x1]
  %v251 = vlaneseq
  %v252 = vshrl.u32 %v251, 7
  %v253 = vsub.s32 0, %v252
  %v254 = vrot.slane %v250, %v253
  %v259 = vunpack.c.l.b16 %v246
  %v260 = vunpack.c.l.b16 %v247
  %v261 = vunpack.c.l.b16 %v248
  %v262 = vunpack.c.l.b16 %v249
  %v263 = vpack.c.b16 %v260, %v259
  %v264 = vpack.c.b16 %v262, %v261
  %v268 = vsel %vm174, %v244, 0
  %v271 = vsel %vm174, %v245, 0
  %273 = vmatprep.subr.bf16.mxu0 0
  %274 = vmatpush1.bf16.msra.mxu0 %v263
  %275 = vmatprep.subr.bf16.mxu0 0
  %276 = vmatpush1.bf16.msra.mxu0 %v264
  %277 = vmatprep.subr.bf16.mxu0 0
  %278 = vmatpush1.bf16.msra.mxu0 0
  %279 = vmatprep.subr.bf16.mxu0 0
  %280 = vmatpush1.bf16.msra.mxu0 0
  %281 = vmatprep.subr.bf16.mxu0 0
  %282 = vmatpush1.bf16.msra.mxu0 0
  %283 = vmatprep.subr.bf16.mxu0 0
  %284 = vmatpush1.bf16.msra.mxu0 0
  %285 = vmatprep.subr.bf16.mxu0 0
  %286 = vmatpush1.bf16.msra.mxu0 0
  %287 = vmatprep.subr.bf16.mxu0 0
  %288 = vmatpush1.bf16.msra.mxu0 0
  %289 = vmatprep.subr.bf16.mxu0 0
  %290 = vmatpush1.bf16.msra.mxu0 0
  %291 = vmatprep.subr.bf16.mxu0 0
  %292 = vmatpush1.bf16.msra.mxu0 0
  %293 = vmatprep.subr.bf16.mxu0 0
  %294 = vmatpush1.bf16.msra.mxu0 0
  %295 = vmatprep.subr.bf16.mxu0 0
  %296 = vmatpush1.bf16.msra.mxu0 0
  %297 = vmatprep.subr.bf16.mxu0 0
  %298 = vmatpush1.bf16.msra.mxu0 0
  %299 = vmatprep.subr.bf16.mxu0 0
  %300 = vmatpush1.bf16.msra.mxu0 0
  %301 = vmatprep.subr.bf16.mxu0 0
  %302 = vmatpush1.bf16.msra.mxu0 0
  %303 = vmatprep.subr.bf16.mxu0 0
  %304 = vmatpush1.bf16.msra.mxu0 0
  %305 = vmatprep.mubr.bf16.mxu0 0
  %306 = vmatmul.mubr.bf16.gmra.mrb[0].mxu0 %v268
  %v307 = vpop.f32.mrb[0].mxu0
  %v308 = vadd.f32 %v254, %v307
  %v309 = vpop.f32.mrb[0].mxu0
  %v310 = vpop.f32.mrb[0].mxu0
  %v311 = vadd.f32 %v254, %v310
  %v312 = vpop.f32.mrb[0].mxu0
  %313 = vmatprep.mubr.bf16.mxu0 0
  %314 = vmatmul.mubr.bf16.gmra.mrb[0].mxu0 %v271
  %v315 = vpop.f32.mrb[0].mxu0
  %v316 = vadd.f32 %v254, %v315
  %v317 = vpop.f32.mrb[0].mxu0
  %v318 = vpop.f32.mrb[0].mxu0
  %v319 = vadd.f32 %v254, %v318
  %v320 = vpop.f32.mrb[0].mxu0
  %321 = vdwg.mxu0
  %v322 = vpack.c.bf16 %v311, %v308
  %v323 = vpack.c.bf16 %v319, %v316
  %328 = vrot.lane.b32.xlu0 %v308, 96
  %v329 = vpop.permute.xlu0 %328
  %330 = vrot.lane.b32.xlu0 %v311, 96
  %v331 = vpop.permute.xlu0 %330
  %332 = vrot.lane.b32.xlu0 %v316, 96
  %v333 = vpop.permute.xlu0 %332
  %334 = vrot.lane.b32.xlu0 %v319, 96
  %v335 = vpop.permute.xlu0 %334
  %340 = vxpose.xlu0.b32.start [1/16] %v329, 128
  %341 = vxpose.xlu0.b32.cont [2/16] %v331, 128
  %342 = vxpose.xlu0.b32.cont [3/16] %v333, 128
  %343 = vxpose.xlu0.b32.cont [4/16] %v335, 128
  %344 = vxpose.xlu0.b32.cont [5/16] 0.0, 128
  %345 = vxpose.xlu0.b32.cont [6/16] 0.0, 128
  %346 = vxpose.xlu0.b32.cont [7/16] 0.0, 128
  %347 = vxpose.xlu0.b32.cont [8/16] 0.0, 128
  %348 = vxpose.xlu0.b32.cont [9/16] 0.0, 128
  %349 = vxpose.xlu0.b32.cont [10/16] 0.0, 128
  %350 = vxpose.xlu0.b32.cont [11/16] 0.0, 128
  %351 = vxpose.xlu0.b32.cont [12/16] 0.0, 128
  %352 = vxpose.xlu0.b32.cont [13/16] 0.0, 128
  %353 = vxpose.xlu0.b32.cont [14/16] 0.0, 128
  %354 = vxpose.xlu0.b32.cont [15/16] 0.0, 128
  %355 = vxpose.xlu0.b32.end [16/16] 0.0, 128
  %v356 = vpop.trf.xlu0
  %v357 = vpop.trf.xlu0
  %v358 = vpop.trf.xlu0
  %v359 = vpop.trf.xlu0
  %v360 = vpop.trf.xlu0
  %v361 = vpop.trf.xlu0
  %v362 = vpop.trf.xlu0
  %v363 = vpop.trf.xlu0
  %v364 = vpop.trf.xlu0
  %v365 = vpop.trf.xlu0
  %v366 = vpop.trf.xlu0
  %v367 = vpop.trf.xlu0
  %v368 = vpop.trf.xlu0
  %v369 = vpop.trf.xlu0
  %v370 = vpop.trf.xlu0
  %v371 = vpop.trf.xlu0
  %376 = vrot.lane.b32.xlu0 %v356, 32
  %v377 = vpop.permute.xlu0 %376
  %378 = vrot.lane.b32.xlu0 %v357, 32
  %v379 = vpop.permute.xlu0 %378
  %380 = vrot.lane.b32.xlu0 %v358, 32
  %v381 = vpop.permute.xlu0 %380
  %382 = vrot.lane.b32.xlu0 %v359, 32
  %v383 = vpop.permute.xlu0 %382
  %388 = vrot.lane.b32.xlu0 %v356, 64
  %v389 = vpop.permute.xlu0 %388
  %390 = vrot.lane.b32.xlu0 %v357, 64
  %v391 = vpop.permute.xlu0 %390
  %392 = vrot.lane.b32.xlu0 %v358, 64
  %v393 = vpop.permute.xlu0 %392
  %394 = vrot.lane.b32.xlu0 %v359, 64
  %v395 = vpop.permute.xlu0 %394
  %400 = vrot.lane.b32.xlu0 %v356, 96
  %v401 = vpop.permute.xlu0 %400
  %402 = vrot.lane.b32.xlu0 %v357, 96
  %v403 = vpop.permute.xlu0 %402
  %404 = vrot.lane.b32.xlu0 %v358, 96
  %v405 = vpop.permute.xlu0 %404
  %406 = vrot.lane.b32.xlu0 %v359, 96
  %v407 = vpop.permute.xlu0 %406
  %v412 = vsel %vm174, %v356, %v377
  %v413 = vsel %vm174, %v357, %v379
  %v414 = vsel %vm174, %v358, %v381
  %v415 = vsel %vm174, %v359, %v383
  %vm416 = vcmask 523264
  %v417 = vsel %vm416, %v412, %v389
  %v418 = vsel %vm416, %v413, %v391
  %v419 = vsel %vm416, %v414, %v393
  %v420 = vsel %vm416, %v415, %v395
  %vm421 = vcmask 785408
  %v422 = vsel %vm421, %v417, %v401
  %v423 = vsel %vm421, %v418, %v403
  %v424 = vsel %vm421, %v419, %v405
  %v425 = vsel %vm421, %v420, %v407
  %v426 = vmul.f32 %v422, %v25
  %v427 = vmul.f32 %v423, %v26
  %v428 = vmul.f32 %v424, %v27
  %v429 = vmul.f32 %v425, %v28
  %v430 = vpack.c.bf16 %v427, %v426
  %v431 = vpack.c.bf16 %v429, %v428
  %448 = vrot.lane.b32.xlu0 %v55, 64
  %v449 = vpop.permute.xlu0 %448
  %450 = vrot.lane.b32.xlu0 %v56, 64
  %v451 = vpop.permute.xlu0 %450
  %452 = vrot.lane.b32.xlu0 %v57, 64
  %v453 = vpop.permute.xlu0 %452
  %454 = vrot.lane.b32.xlu0 %v58, 64
  %v455 = vpop.permute.xlu0 %454
  %456 = vrot.lane.b32.xlu0 %v59, 64
  %v457 = vpop.permute.xlu0 %456
  %458 = vrot.lane.b32.xlu0 %v60, 64
  %v459 = vpop.permute.xlu0 %458
  %460 = vrot.lane.b32.xlu0 %v61, 64
  %v461 = vpop.permute.xlu0 %460
  %462 = vrot.lane.b32.xlu0 %v62, 64
  %v463 = vpop.permute.xlu0 %462
  %464 = vrot.lane.b32.xlu0 %v63, 64
  %v465 = vpop.permute.xlu0 %464
  %466 = vrot.lane.b32.xlu0 %v64, 64
  %v467 = vpop.permute.xlu0 %466
  %468 = vrot.lane.b32.xlu0 %v65, 64
  %v469 = vpop.permute.xlu0 %468
  %470 = vrot.lane.b32.xlu0 %v66, 64
  %v471 = vpop.permute.xlu0 %470
  %472 = vrot.lane.b32.xlu0 %v67, 64
  %v473 = vpop.permute.xlu0 %472
  %474 = vrot.lane.b32.xlu0 %v68, 64
  %v475 = vpop.permute.xlu0 %474
  %476 = vrot.lane.b32.xlu0 %v69, 64
  %v477 = vpop.permute.xlu0 %476
  %478 = vrot.lane.b32.xlu0 %v70, 64
  %v479 = vpop.permute.xlu0 %478
  %v496 = vmul.f32 %v308, %v449
  %v497 = vmul.f32 %v311, %v451
  %v498 = vmul.f32 %v316, %v453
  %v499 = vmul.f32 %v319, %v455
  %v500 = vmul.f32 %v308, %v457
  %v501 = vmul.f32 %v311, %v459
  %v502 = vmul.f32 %v316, %v461
  %v503 = vmul.f32 %v319, %v463
  %v504 = vmul.f32 %v308, %v465
  %v505 = vmul.f32 %v311, %v467
  %v506 = vmul.f32 %v316, %v469
  %v507 = vmul.f32 %v319, %v471
  %v508 = vmul.f32 %v308, %v473
  %v509 = vmul.f32 %v311, %v475
  %v510 = vmul.f32 %v316, %v477
  %v511 = vmul.f32 %v319, %v479
  %v512 = vpack.c.bf16 %v497, %v496
  %v513 = vpack.c.bf16 %v499, %v498
  %v514 = vpack.c.bf16 %v501, %v500
  %v515 = vpack.c.bf16 %v503, %v502
  %v516 = vpack.c.bf16 %v505, %v504
  %v517 = vpack.c.bf16 %v507, %v506
  %v518 = vpack.c.bf16 %v509, %v508
  %v519 = vpack.c.bf16 %v511, %v510
  %v521 = vsel %vm174, %v322, 0
  %v524 = vsel %vm174, %v323, 0
  %526 = vmatprep.subr.bf16.mxu0 0
  %527 = vmatpush1.bf16.msra.mxu0 %v430
  %528 = vmatprep.subr.bf16.mxu0 0
  %529 = vmatpush1.bf16.msra.mxu0 %v431
  %530 = vmatprep.subr.bf16.mxu0 0
  %531 = vmatpush1.bf16.msra.mxu0 0
  %532 = vmatprep.subr.bf16.mxu0 0
  %533 = vmatpush1.bf16.msra.mxu0 0
  %534 = vmatprep.subr.bf16.mxu0 0
  %535 = vmatpush1.bf16.msra.mxu0 0
  %536 = vmatprep.subr.bf16.mxu0 0
  %537 = vmatpush1.bf16.msra.mxu0 0
  %538 = vmatprep.subr.bf16.mxu0 0
  %539 = vmatpush1.bf16.msra.mxu0 0
  %540 = vmatprep.subr.bf16.mxu0 0
  %541 = vmatpush1.bf16.msra.mxu0 0
  %542 = vmatprep.subr.bf16.mxu0 0
  %543 = vmatpush1.bf16.msra.mxu0 0
  %544 = vmatprep.subr.bf16.mxu0 0
  %545 = vmatpush1.bf16.msra.mxu0 0
  %546 = vmatprep.subr.bf16.mxu0 0
  %547 = vmatpush1.bf16.msra.mxu0 0
  %548 = vmatprep.subr.bf16.mxu0 0
  %549 = vmatpush1.bf16.msra.mxu0 0
  %550 = vmatprep.subr.bf16.mxu0 0
  %551 = vmatpush1.bf16.msra.mxu0 0
  %552 = vmatprep.subr.bf16.mxu0 0
  %553 = vmatpush1.bf16.msra.mxu0 0
  %554 = vmatprep.subr.bf16.mxu0 0
  %555 = vmatpush1.bf16.msra.mxu0 0
  %556 = vmatprep.subr.bf16.mxu0 0
  %557 = vmatpush1.bf16.msra.mxu0 0
  %558 = vmatprep.mubr.bf16.mxu0 0
  %559 = vmatmul.mubr.bf16.gmra.mrb[0].mxu0 %v521
  %v560 = vpop.f32.mrb[0].mxu0
  %v561 = vadd.f32 %v33, %v560
  %v562 = vpop.f32.mrb[0].mxu0
  %v563 = vpop.f32.mrb[0].mxu0
  %v564 = vadd.f32 %v34, %v563
  %v565 = vpop.f32.mrb[0].mxu0
  %566 = vmatprep.mubr.bf16.mxu0 0
  %567 = vmatmul.mubr.bf16.gmra.mrb[0].mxu0 %v524
  %v568 = vpop.f32.mrb[0].mxu0
  %v569 = vadd.f32 %v35, %v568
  %v570 = vpop.f32.mrb[0].mxu0
  %v571 = vpop.f32.mrb[0].mxu0
  %v572 = vadd.f32 %v36, %v571
  %v573 = vpop.f32.mrb[0].mxu0
  %574 = vdwg.mxu0
  %575 = vmax.xlane.f32.xlu0 %v561
  %v576 = vpop.xlane.xlu0 %575
  %577 = vmax.xlane.f32.xlu0 %v564
  %v578 = vpop.xlane.xlu0 %577
  %579 = vmax.xlane.f32.xlu0 %v569
  %v580 = vpop.xlane.xlu0 %579
  %581 = vmax.xlane.f32.xlu0 %v572
  %v582 = vpop.xlane.xlu0 %581
  %v583 = vsub.f32 %v561, %v576
  %v584 = vsub.f32 %v564, %v578
  %v585 = vsub.f32 %v569, %v580
  %v586 = vsub.f32 %v572, %v582
  %v587 = vmul.f32 %v583, 1.442695
  %v588 = vpow.pop %v587
  %v589 = vmul.f32 %v584, 1.442695
  %v590 = vpow.pop %v589
  %v591 = vmul.f32 %v585, 1.442695
  %v592 = vpow.pop %v591
  %v593 = vmul.f32 %v586, 1.442695
  %v594 = vpow.pop %v593
  %v595 = vpack.c.bf16 %v590, %v588
  %v596 = vpack.c.bf16 %v594, %v592
  %605 = vrot.lane.b32.xlu0 %v512, 64
  %v606 = vpop.permute.xlu0 %605
  %607 = vrot.lane.b32.xlu0 %v513, 64
  %v608 = vpop.permute.xlu0 %607
  %609 = vrot.lane.b32.xlu0 %v514, 64
  %v610 = vpop.permute.xlu0 %609
  %611 = vrot.lane.b32.xlu0 %v515, 64
  %v612 = vpop.permute.xlu0 %611
  %613 = vrot.lane.b32.xlu0 %v516, 64
  %v614 = vpop.permute.xlu0 %613
  %615 = vrot.lane.b32.xlu0 %v517, 64
  %v616 = vpop.permute.xlu0 %615
  %617 = vrot.lane.b32.xlu0 %v518, 64
  %v618 = vpop.permute.xlu0 %617
  %619 = vrot.lane.b32.xlu0 %v519, 64
  %v620 = vpop.permute.xlu0 %619
  %629 = vmatprep.subr.bf16.mxu0 0
  %630 = vmatpush1.bf16.msra.mxu0 %v606
  %631 = vmatprep.subr.bf16.mxu0 0
  %632 = vmatpush1.bf16.msra.mxu0 %v608
  %633 = vmatprep.subr.bf16.mxu0 0
  %634 = vmatpush1.bf16.msra.mxu0 %v610
  %635 = vmatprep.subr.bf16.mxu0 0
  %636 = vmatpush1.bf16.msra.mxu0 %v612
  %637 = vmatprep.subr.bf16.mxu0 0
  %638 = vmatpush1.bf16.msra.mxu0 %v614
  %639 = vmatprep.subr.bf16.mxu0 0
  %640 = vmatpush1.bf16.msra.mxu0 %v616
  %641 = vmatprep.subr.bf16.mxu0 0
  %642 = vmatpush1.bf16.msra.mxu0 %v618
  %643 = vmatprep.subr.bf16.mxu0 0
  %644 = vmatpush1.bf16.msra.mxu0 %v620
  %645 = vmatprep.subr.bf16.mxu0 0
  %646 = vmatpush1.bf16.msra.mxu0 0
  %647 = vmatprep.subr.bf16.mxu0 0
  %648 = vmatpush1.bf16.msra.mxu0 0
  %649 = vmatprep.subr.bf16.mxu0 0
  %650 = vmatpush1.bf16.msra.mxu0 0
  %651 = vmatprep.subr.bf16.mxu0 0
  %652 = vmatpush1.bf16.msra.mxu0 0
  %653 = vmatprep.subr.bf16.mxu0 0
  %654 = vmatpush1.bf16.msra.mxu0 0
  %655 = vmatprep.subr.bf16.mxu0 0
  %656 = vmatpush1.bf16.msra.mxu0 0
  %657 = vmatprep.subr.bf16.mxu0 0
  %658 = vmatpush1.bf16.msra.mxu0 0
  %659 = vmatprep.subr.bf16.mxu0 0
  %660 = vmatpush1.bf16.msra.mxu0 0
  %661 = vmatprep.mubr.bf16.mxu0 0
  %662 = vmatmul.mubr.bf16.gmra.mrb[0].mxu0 %v595
  %v663 = vpop.f32.mrb[0].mxu0
  %v664 = vadd.f32 0.0, %v663
  %v665 = vpop.f32.mrb[0].mxu0
  %v666 = vpop.f32.mrb[0].mxu0
  %v667 = vadd.f32 0.0, %v666
  %v668 = vpop.f32.mrb[0].mxu0
  %669 = vmatprep.mubr.bf16.mxu0 0
  %670 = vmatmul.mubr.bf16.gmra.mrb[0].mxu0 %v596
  %v671 = vpop.f32.mrb[0].mxu0
  %v672 = vadd.f32 0.0, %v671
  %v673 = vpop.f32.mrb[0].mxu0
  %v674 = vpop.f32.mrb[0].mxu0
  %v675 = vadd.f32 0.0, %v674
  %v676 = vpop.f32.mrb[0].mxu0
  %677 = vdwg.mxu0
  %v694 = vunpack.c.l.b16 %v39
  %v695 = vunpack.c.l.b16 %v40
  %v696 = vunpack.c.l.b16 %v41
  %v697 = vunpack.c.l.b16 %v42
  %v698 = vunpack.c.l.b16 %v43
  %v699 = vunpack.c.l.b16 %v44
  %v700 = vunpack.c.l.b16 %v45
  %v701 = vunpack.c.l.b16 %v46
  %v702 = vunpack.c.l.b16 %v47
  %v703 = vunpack.c.l.b16 %v48
  %v704 = vunpack.c.l.b16 %v49
  %v705 = vunpack.c.l.b16 %v50
  %v706 = vunpack.c.l.b16 %v51
  %v707 = vunpack.c.l.b16 %v52
  %v708 = vunpack.c.l.b16 %v53
  %v709 = vunpack.c.l.b16 %v54
  %v710 = vpack.c.b16 %v695, %v694
  %v711 = vpack.c.b16 %v697, %v696
  %v712 = vpack.c.b16 %v699, %v698
  %v713 = vpack.c.b16 %v701, %v700
  %v714 = vpack.c.b16 %v703, %v702
  %v715 = vpack.c.b16 %v705, %v704
  %v716 = vpack.c.b16 %v707, %v706
  %v717 = vpack.c.b16 %v709, %v708
  %726 = vmatprep.subr.bf16.mxu0 0
  %727 = vmatpush1.bf16.msra.mxu0 %v710
  %728 = vmatprep.subr.bf16.mxu0 0
  %729 = vmatpush1.bf16.msra.mxu0 %v711
  %730 = vmatprep.subr.bf16.mxu0 0
  %731 = vmatpush1.bf16.msra.mxu0 %v712
  %732 = vmatprep.subr.bf16.mxu0 0
  %733 = vmatpush1.bf16.msra.mxu0 %v713
  %734 = vmatprep.subr.bf16.mxu0 0
  %735 = vmatpush1.bf16.msra.mxu0 %v714
  %736 = vmatprep.subr.bf16.mxu0 0
  %737 = vmatpush1.bf16.msra.mxu0 %v715
  %738 = vmatprep.subr.bf16.mxu0 0
  %739 = vmatpush1.bf16.msra.mxu0 %v716
  %740 = vmatprep.subr.bf16.mxu0 0
  %741 = vmatpush1.bf16.msra.mxu0 %v717
  %742 = vmatprep.subr.bf16.mxu0 0
  %743 = vmatpush1.bf16.msra.mxu0 0
  %744 = vmatprep.subr.bf16.mxu0 0
  %745 = vmatpush1.bf16.msra.mxu0 0
  %746 = vmatprep.subr.bf16.mxu0 0
  %747 = vmatpush1.bf16.msra.mxu0 0
  %748 = vmatprep.subr.bf16.mxu0 0
  %749 = vmatpush1.bf16.msra.mxu0 0
  %750 = vmatprep.subr.bf16.mxu0 0
  %751 = vmatpush1.bf16.msra.mxu0 0
  %752 = vmatprep.subr.bf16.mxu0 0
  %753 = vmatpush1.bf16.msra.mxu0 0
  %754 = vmatprep.subr.bf16.mxu0 0
  %755 = vmatpush1.bf16.msra.mxu0 0
  %756 = vmatprep.subr.bf16.mxu0 0
  %757 = vmatpush1.bf16.msra.mxu0 0
  %758 = vmatprep.mubr.bf16.mxu0 0
  %759 = vmatmul.mubr.bf16.gmra.mrb[0].mxu0 %v595
  %v760 = vpop.f32.mrb[0].mxu0
  %v761 = vadd.f32 0.0, %v760
  %v762 = vpop.f32.mrb[0].mxu0
  %v763 = vpop.f32.mrb[0].mxu0
  %v764 = vadd.f32 0.0, %v763
  %v765 = vpop.f32.mrb[0].mxu0
  %766 = vmatprep.mubr.bf16.mxu0 0
  %767 = vmatmul.mubr.bf16.gmra.mrb[0].mxu0 %v596
  %v768 = vpop.f32.mrb[0].mxu0
  %v769 = vadd.f32 0.0, %v768
  %v770 = vpop.f32.mrb[0].mxu0
  %v771 = vpop.f32.mrb[0].mxu0
  %v772 = vadd.f32 0.0, %v771
  %v773 = vpop.f32.mrb[0].mxu0
  %774 = vdwg.mxu0
  %v775 = vrcp.pop %v761
  %v776 = vrcp.pop %v764
  %v777 = vrcp.pop %v769
  %v778 = vrcp.pop %v772
  %v779 = vmul.f32 %v664, %v775
  %v780 = vmul.f32 %v667, %v776
  %v781 = vmul.f32 %v672, %v777
  %v782 = vmul.f32 %v675, %v778
  %v783 = vpack.c.bf16 %v780, %v779
  %v784 = vpack.c.bf16 %v782, %v781
  %s785 = scalar_lea.vmem %s1, 16
  %v786 = vld [vmem:[%s785] sm:$0xf]
  %v787 = vld [vmem:[%s785 + $0x4] sm:$0xf]
  %v788 = vld [vmem:[%s785 + $0x8] sm:$0xf]
  %v789 = vld [vmem:[%s785 + $0xc] sm:$0xf]
  %v790 = vld [vmem:[%s3 + $0x3] sm:$0x1]
  %v791 = vlaneseq
  %v792 = vshrl.u32 %v791, 7
  %v793 = vsub.s32 0, %v792
  %v794 = vrot.slane %v790, %v793
  %v799 = vunpack.c.l.b16 %v786
  %v800 = vunpack.c.l.b16 %v787
  %v801 = vunpack.c.l.b16 %v788
  %v802 = vunpack.c.l.b16 %v789
  %v803 = vpack.c.b16 %v800, %v799
  %v804 = vpack.c.b16 %v802, %v801
  %v808 = vsel %vm174, %v783, 0
  %v811 = vsel %vm174, %v784, 0
  %813 = vmatprep.subr.bf16.mxu0 0
  %814 = vmatpush1.bf16.msra.mxu0 %v803
  %815 = vmatprep.subr.bf16.mxu0 0
  %816 = vmatpush1.bf16.msra.mxu0 %v804
  %817 = vmatprep.subr.bf16.mxu0 0
  %818 = vmatpush1.bf16.msra.mxu0 0
  %819 = vmatprep.subr.bf16.mxu0 0
  %820 = vmatpush1.bf16.msra.mxu0 0
  %821 = vmatprep.subr.bf16.mxu0 0
  %822 = vmatpush1.bf16.msra.mxu0 0
  %823 = vmatprep.subr.bf16.mxu0 0
  %824 = vmatpush1.bf16.msra.mxu0 0
  %825 = vmatprep.subr.bf16.mxu0 0
  %826 = vmatpush1.bf16.msra.mxu0 0
  %827 = vmatprep.subr.bf16.mxu0 0
  %828 = vmatpush1.bf16.msra.mxu0 0
  %829 = vmatprep.subr.bf16.mxu0 0
  %830 = vmatpush1.bf16.msra.mxu0 0
  %831 = vmatprep.subr.bf16.mxu0 0
  %832 = vmatpush1.bf16.msra.mxu0 0
  %833 = vmatprep.subr.bf16.mxu0 0
  %834 = vmatpush1.bf16.msra.mxu0 0
  %835 = vmatprep.subr.bf16.mxu0 0
  %836 = vmatpush1.bf16.msra.mxu0 0
  %837 = vmatprep.subr.bf16.mxu0 0
  %838 = vmatpush1.bf16.msra.mxu0 0
  %839 = vmatprep.subr.bf16.mxu0 0
  %840 = vmatpush1.bf16.msra.mxu0 0
  %841 = vmatprep.subr.bf16.mxu0 0
  %842 = vmatpush1.bf16.msra.mxu0 0
  %843 = vmatprep.subr.bf16.mxu0 0
  %844 = vmatpush1.bf16.msra.mxu0 0
  %845 = vmatprep.mubr.bf16.mxu0 0
  %846 = vmatmul.mubr.bf16.gmra.mrb[0].mxu0 %v808
  %v847 = vpop.f32.mrb[0].mxu0
  %v848 = vadd.f32 %v794, %v847
  %v849 = vpop.f32.mrb[0].mxu0
  %v850 = vpop.f32.mrb[0].mxu0
  %v851 = vadd.f32 %v794, %v850
  %v852 = vpop.f32.mrb[0].mxu0
  %853 = vmatprep.mubr.bf16.mxu0 0
  %854 = vmatmul.mubr.bf16.gmra.mrb[0].mxu0 %v811
  %v855 = vpop.f32.mrb[0].mxu0
  %v856 = vadd.f32 %v794, %v855
  %v857 = vpop.f32.mrb[0].mxu0
  %v858 = vpop.f32.mrb[0].mxu0
  %v859 = vadd.f32 %v794, %v858
  %v860 = vpop.f32.mrb[0].mxu0
  %861 = vdwg.mxu0
  %v862 = vadd.f32 %v158, %v848
  %v863 = vadd.f32 %v161, %v851
  %v864 = vadd.f32 %v166, %v856
  %v865 = vadd.f32 %v169, %v859
  %v866 = vld [vmem:[%s3 + $0x4] sm:$0x1]
  %v867 = vld [vmem:[%s3 + $0x5] sm:$0x1]
  %v868 = vsel %vm174, %v862, 0.0
  %869 = vadd.xlane.f32.xlu0 %v868
  %v870 = vpop.xlane.xlu0 %869
  %v871 = vsel %vm174, %v863, 0.0
  %872 = vadd.xlane.f32.xlu0 %v871
  %v873 = vpop.xlane.xlu0 %872
  %v874 = vsel %vm174, %v864, 0.0
  %875 = vadd.xlane.f32.xlu0 %v874
  %v876 = vpop.xlane.xlu0 %875
  %v877 = vsel %vm174, %v865, 0.0
  %878 = vadd.xlane.f32.xlu0 %v877
  %v879 = vpop.xlane.xlu0 %878
  %v880 = vmul.f32 %v870, %v187
  %v881 = vmul.f32 %v873, %v187
  %v882 = vmul.f32 %v876, %v187
  %v883 = vmul.f32 %v879, %v187
  %v884 = vsub.f32 %v862, %v880
  %v885 = vsub.f32 %v863, %v881
  %v886 = vsub.f32 %v864, %v882
  %v887 = vsub.f32 %v865, %v883
  %v888 = vmul.f32 %v884, %v884
  %v889 = vmul.f32 %v885, %v885
  %v890 = vmul.f32 %v886, %v886
  %v891 = vmul.f32 %v887, %v887
  %v892 = vsel %vm174, %v888, 0.0
  %893 = vadd.xlane.f32.xlu0 %v892
  %v894 = vpop.xlane.xlu0 %893
  %v895 = vsel %vm174, %v889, 0.0
  %896 = vadd.xlane.f32.xlu0 %v895
  %v897 = vpop.xlane.xlu0 %896
  %v898 = vsel %vm174, %v890, 0.0
  %899 = vadd.xlane.f32.xlu0 %v898
  %v900 = vpop.xlane.xlu0 %899
  %v901 = vsel %vm174, %v891, 0.0
  %902 = vadd.xlane.f32.xlu0 %v901
  %v903 = vpop.xlane.xlu0 %902
  %v904 = vmul.f32 %v894, %v187
  %v905 = vmul.f32 %v897, %v187
  %v906 = vmul.f32 %v900, %v187
  %v907 = vmul.f32 %v903, %v187
  %v908 = vadd.f32 %v904, 1e-05
  %v909 = vadd.f32 %v905, 1e-05
  %v910 = vadd.f32 %v906, 1e-05
  %v911 = vadd.f32 %v907, 1e-05
  %v912 = vrsqrt.pop %v908
  %v913 = vrsqrt.pop %v909
  %v914 = vrsqrt.pop %v910
  %v915 = vrsqrt.pop %v911
  %v916 = vmul.f32 %v884, %v912
  %v917 = vmul.f32 %v885, %v913
  %v918 = vmul.f32 %v886, %v914
  %v919 = vmul.f32 %v887, %v915
  %v920 = vlaneseq
  %v921 = vshrl.u32 %v920, 7
  %v922 = vsub.s32 0, %v921
  %v923 = vrot.slane %v866, %v922
  %v924 = vmul.f32 %v916, %v923
  %v925 = vmul.f32 %v917, %v923
  %v926 = vmul.f32 %v918, %v923
  %v927 = vmul.f32 %v919, %v923
  %v928 = vlaneseq
  %v929 = vshrl.u32 %v928, 7
  %v930 = vsub.s32 0, %v929
  %v931 = vrot.slane %v867, %v930
  %v932 = vadd.f32 %v924, %v931
  %v933 = vadd.f32 %v925, %v931
  %v934 = vadd.f32 %v926, %v931
  %v935 = vadd.f32 %v927, %v931
  %v936 = vpack.c.bf16 %v933, %v932
  %v937 = vpack.c.bf16 %v935, %v934
  %s938 = scalar_lea.vmem %s1, 32
  %v939 = vld [vmem:[%s938] sm:$0xf]
  %v940 = vld [vmem:[%s938 + $0x4] sm:$0xf]
  %v941 = vld [vmem:[%s938 + $0x8] sm:$0xf]
  %v942 = vld [vmem:[%s938 + $0xc] sm:$0xf]
  %v943 = vld [vmem:[%s3 + $0x6] sm:$0x1]
  %v944 = vlaneseq
  %v945 = vshrl.u32 %v944, 7
  %v946 = vsub.s32 0, %v945
  %v947 = vrot.slane %v943, %v946
  %v952 = vunpack.c.l.b16 %v939
  %v953 = vunpack.c.l.b16 %v940
  %v954 = vunpack.c.l.b16 %v941
  %v955 = vunpack.c.l.b16 %v942
  %v956 = vpack.c.b16 %v953, %v952
  %v957 = vpack.c.b16 %v955, %v954
  %v961 = vsel %vm174, %v936, 0
  %v964 = vsel %vm174, %v937, 0
  %966 = vmatprep.subr.bf16.mxu0 0
  %967 = vmatpush1.bf16.msra.mxu0 %v956
  %968 = vmatprep.subr.bf16.mxu0 0
  %969 = vmatpush1.bf16.msra.mxu0 %v957
  %970 = vmatprep.subr.bf16.mxu0 0
  %971 = vmatpush1.bf16.msra.mxu0 0
  %972 = vmatprep.subr.bf16.mxu0 0
  %973 = vmatpush1.bf16.msra.mxu0 0
  %974 = vmatprep.subr.bf16.mxu0 0
  %975 = vmatpush1.bf16.msra.mxu0 0
  %976 = vmatprep.subr.bf16.mxu0 0
  %977 = vmatpush1.bf16.msra.mxu0 0
  %978 = vmatprep.subr.bf16.mxu0 0
  %979 = vmatpush1.bf16.msra.mxu0 0
  %980 = vmatprep.subr.bf16.mxu0 0
  %981 = vmatpush1.bf16.msra.mxu0 0
  %982 = vmatprep.subr.bf16.mxu0 0
  %983 = vmatpush1.bf16.msra.mxu0 0
  %984 = vmatprep.subr.bf16.mxu0 0
  %985 = vmatpush1.bf16.msra.mxu0 0
  %986 = vmatprep.subr.bf16.mxu0 0
  %987 = vmatpush1.bf16.msra.mxu0 0
  %988 = vmatprep.subr.bf16.mxu0 0
  %989 = vmatpush1.bf16.msra.mxu0 0
  %990 = vmatprep.subr.bf16.mxu0 0
  %991 = vmatpush1.bf16.msra.mxu0 0
  %992 = vmatprep.subr.bf16.mxu0 0
  %993 = vmatpush1.bf16.msra.mxu0 0
  %994 = vmatprep.subr.bf16.mxu0 0
  %995 = vmatpush1.bf16.msra.mxu0 0
  %996 = vmatprep.subr.bf16.mxu0 0
  %997 = vmatpush1.bf16.msra.mxu0 0
  %998 = vmatprep.mubr.bf16.mxu0 0
  %999 = vmatmul.mubr.bf16.gmra.mrb[0].mxu0 %v961
  %v1000 = vpop.f32.mrb[0].mxu0
  %v1001 = vadd.f32 %v947, %v1000
  %v1002 = vpop.f32.mrb[0].mxu0
  %v1003 = vpop.f32.mrb[0].mxu0
  %v1004 = vadd.f32 %v947, %v1003
  %v1005 = vpop.f32.mrb[0].mxu0
  %1006 = vmatprep.mubr.bf16.mxu0 0
  %1007 = vmatmul.mubr.bf16.gmra.mrb[0].mxu0 %v964
  %v1008 = vpop.f32.mrb[0].mxu0
  %v1009 = vadd.f32 %v947, %v1008
  %v1010 = vpop.f32.mrb[0].mxu0
  %v1011 = vpop.f32.mrb[0].mxu0
  %v1012 = vadd.f32 %v947, %v1011
  %v1013 = vpop.f32.mrb[0].mxu0
  %1014 = vdwg.mxu0
  %v1015 = vmax.f32 %v1001, 0.0
  %v1016 = vmax.f32 %v1004, 0.0
  %v1017 = vmax.f32 %v1009, 0.0
  %v1018 = vmax.f32 %v1012, 0.0
  %v1019 = vpack.c.bf16 %v1016, %v1015
  %v1020 = vpack.c.bf16 %v1018, %v1017
  %v1021 = vld [vmem:[%s2] sm:$0xf]
  %v1022 = vld [vmem:[%s2 + $0x4] sm:$0xf]
  %v1023 = vld [vmem:[%s2 + $0x8] sm:$0xf]
  %v1024 = vld [vmem:[%s2 + $0xc] sm:$0xf]
  %v1025 = vld [vmem:[%s2 + $0x10] sm:$0xf]
  %v1026 = vld [vmem:[%s2 + $0x14] sm:$0xf]
  %v1027 = vld [vmem:[%s2 + $0x18] sm:$0xf]
  %v1028 = vld [vmem:[%s2 + $0x1c] sm:$0xf]
  %v1029 = vld [vmem:[%s2 + $0x20] sm:$0xf]
  %v1030 = vld [vmem:[%s2 + $0x24] sm:$0xf]
  %v1031 = vld [vmem:[%s2 + $0x28] sm:$0xf]
  %v1032 = vld [vmem:[%s2 + $0x2c] sm:$0xf]
  %v1033 = vld [vmem:[%s2 + $0x30] sm:$0xf]
  %v1034 = vld [vmem:[%s2 + $0x34] sm:$0xf]
  %v1035 = vld [vmem:[%s2 + $0x38] sm:$0xf]
  %v1036 = vld [vmem:[%s2 + $0x3c] sm:$0xf]
  %v1037 = vld [vmem:[%s3 + $0x7] sm:$0x1]
  %v1038 = vlaneseq
  %v1039 = vshrl.u32 %v1038, 7
  %v1040 = vsub.s32 0, %v1039
  %v1041 = vrot.slane %v1037, %v1040
  %v1058 = vunpack.c.l.b16 %v1021
  %v1059 = vunpack.c.l.b16 %v1022
  %v1060 = vunpack.c.l.b16 %v1023
  %v1061 = vunpack.c.l.b16 %v1024
  %v1062 = vunpack.c.l.b16 %v1025
  %v1063 = vunpack.c.l.b16 %v1026
  %v1064 = vunpack.c.l.b16 %v1027
  %v1065 = vunpack.c.l.b16 %v1028
  %v1066 = vunpack.c.l.b16 %v1029
  %v1067 = vunpack.c.l.b16 %v1030
  %v1068 = vunpack.c.l.b16 %v1031
  %v1069 = vunpack.c.l.b16 %v1032
  %v1070 = vunpack.c.l.b16 %v1033
  %v1071 = vunpack.c.l.b16 %v1034
  %v1072 = vunpack.c.l.b16 %v1035
  %v1073 = vunpack.c.l.b16 %v1036
  %v1074 = vpack.c.b16 %v1059, %v1058
  %v1075 = vpack.c.b16 %v1061, %v1060
  %v1076 = vpack.c.b16 %v1063, %v1062
  %v1077 = vpack.c.b16 %v1065, %v1064
  %v1078 = vpack.c.b16 %v1067, %v1066
  %v1079 = vpack.c.b16 %v1069, %v1068
  %v1080 = vpack.c.b16 %v1071, %v1070
  %v1081 = vpack.c.b16 %v1073, %v1072
  %1090 = vmatprep.subr.bf16.mxu0 0
  %1091 = vmatpush1.bf16.msra.mxu0 %v1074
  %1092 = vmatprep.subr.bf16.mxu0 0
  %1093 = vmatpush1.bf16.msra.mxu0 %v1075
  %1094 = vmatprep.subr.bf16.mxu0 0
  %1095 = vmatpush1.bf16.msra.mxu0 %v1076
  %1096 = vmatprep.subr.bf16.mxu0 0
  %1097 = vmatpush1.bf16.msra.mxu0 %v1077
  %1098 = vmatprep.subr.bf16.mxu0 0
  %1099 = vmatpush1.bf16.msra.mxu0 %v1078
  %1100 = vmatprep.subr.bf16.mxu0 0
  %1101 = vmatpush1.bf16.msra.mxu0 %v1079
  %1102 = vmatprep.subr.bf16.mxu0 0
  %1103 = vmatpush1.bf16.msra.mxu0 %v1080
  %1104 = vmatprep.subr.bf16.mxu0 0
  %1105 = vmatpush1.bf16.msra.mxu0 %v1081
  %1106 = vmatprep.subr.bf16.mxu0 0
  %1107 = vmatpush1.bf16.msra.mxu0 0
  %1108 = vmatprep.subr.bf16.mxu0 0
  %1109 = vmatpush1.bf16.msra.mxu0 0
  %1110 = vmatprep.subr.bf16.mxu0 0
  %1111 = vmatpush1.bf16.msra.mxu0 0
  %1112 = vmatprep.subr.bf16.mxu0 0
  %1113 = vmatpush1.bf16.msra.mxu0 0
  %1114 = vmatprep.subr.bf16.mxu0 0
  %1115 = vmatpush1.bf16.msra.mxu0 0
  %1116 = vmatprep.subr.bf16.mxu0 0
  %1117 = vmatpush1.bf16.msra.mxu0 0
  %1118 = vmatprep.subr.bf16.mxu0 0
  %1119 = vmatpush1.bf16.msra.mxu0 0
  %1120 = vmatprep.subr.bf16.mxu0 0
  %1121 = vmatpush1.bf16.msra.mxu0 0
  %1122 = vmatprep.mubr.bf16.mxu0 0
  %1123 = vmatmul.mubr.bf16.gmra.mrb[0].mxu0 %v1019
  %v1124 = vpop.f32.mrb[0].mxu0
  %v1125 = vadd.f32 %v1041, %v1124
  %v1126 = vpop.f32.mrb[0].mxu0
  %v1127 = vpop.f32.mrb[0].mxu0
  %v1128 = vadd.f32 %v1041, %v1127
  %v1129 = vpop.f32.mrb[0].mxu0
  %1130 = vmatprep.mubr.bf16.mxu0 0
  %1131 = vmatmul.mubr.bf16.gmra.mrb[0].mxu0 %v1020
  %v1132 = vpop.f32.mrb[0].mxu0
  %v1133 = vadd.f32 %v1041, %v1132
  %v1134 = vpop.f32.mrb[0].mxu0
  %v1135 = vpop.f32.mrb[0].mxu0
  %v1136 = vadd.f32 %v1041, %v1135
  %v1137 = vpop.f32.mrb[0].mxu0
  %1138 = vdwg.mxu0
  %v1139 = vadd.f32 %v862, %v1125
  %v1140 = vadd.f32 %v863, %v1128
  %v1141 = vadd.f32 %v864, %v1133
  %v1142 = vadd.f32 %v865, %v1136
  %v1143 = vld [vmem:[%s3 + $0x8] sm:$0x1]
  %v1144 = vld [vmem:[%s3 + $0x9] sm:$0x1]
  %v1145 = vsel %vm174, %v1139, 0.0
  %1146 = vadd.xlane.f32.xlu0 %v1145
  %v1147 = vpop.xlane.xlu0 %1146
  %v1148 = vsel %vm174, %v1140, 0.0
  %1149 = vadd.xlane.f32.xlu0 %v1148
  %v1150 = vpop.xlane.xlu0 %1149
  %v1151 = vsel %vm174, %v1141, 0.0
  %1152 = vadd.xlane.f32.xlu0 %v1151
  %v1153 = vpop.xlane.xlu0 %1152
  %v1154 = vsel %vm174, %v1142, 0.0
  %1155 = vadd.xlane.f32.xlu0 %v1154
  %v1156 = vpop.xlane.xlu0 %1155
  %v1157 = vmul.f32 %v1147, %v187
  %v1158 = vmul.f32 %v1150, %v187
  %v1159 = vmul.f32 %v1153, %v187
  %v1160 = vmul.f32 %v1156, %v187
  %v1161 = vsub.f32 %v1139, %v1157
  %v1162 = vsub.f32 %v1140, %v1158
  %v1163 = vsub.f32 %v1141, %v1159
  %v1164 = vsub.f32 %v1142, %v1160
  %v1165 = vmul.f32 %v1161, %v1161
  %v1166 = vmul.f32 %v1162, %v1162
  %v1167 = vmul.f32 %v1163, %v1163
  %v1168 = vmul.f32 %v1164, %v1164
  %v1169 = vsel %vm174, %v1165, 0.0
  %1170 = vadd.xlane.f32.xlu0 %v1169
  %v1171 = vpop.xlane.xlu0 %1170
  %v1172 = vsel %vm174, %v1166, 0.0
  %1173 = vadd.xlane.f32.xlu0 %v1172
  %v1174 = vpop.xlane.xlu0 %1173
  %v1175 = vsel %vm174, %v1167, 0.0
  %1176 = vadd.xlane.f32.xlu0 %v1175
  %v1177 = vpop.xlane.xlu0 %1176
  %v1178 = vsel %vm174, %v1168, 0.0
  %1179 = vadd.xlane.f32.xlu0 %v1178
  %v1180 = vpop.xlane.xlu0 %1179
  %v1181 = vmul.f32 %v1171, %v187
  %v1182 = vmul.f32 %v1174, %v187
  %v1183 = vmul.f32 %v1177, %v187
  %v1184 = vmul.f32 %v1180, %v187
  %v1185 = vadd.f32 %v1181, 1e-05
  %v1186 = vadd.f32 %v1182, 1e-05
  %v1187 = vadd.f32 %v1183, 1e-05
  %v1188 = vadd.f32 %v1184, 1e-05
  %v1189 = vrsqrt.pop %v1185
  %v1190 = vrsqrt.pop %v1186
  %v1191 = vrsqrt.pop %v1187
  %v1192 = vrsqrt.pop %v1188
  %v1193 = vmul.f32 %v1161, %v1189
  %v1194 = vmul.f32 %v1162, %v1190
  %v1195 = vmul.f32 %v1163, %v1191
  %v1196 = vmul.f32 %v1164, %v1192
  %v1197 = vlaneseq
  %v1198 = vshrl.u32 %v1197, 7
  %v1199 = vsub.s32 0, %v1198
  %v1200 = vrot.slane %v1143, %v1199
  %v1201 = vmul.f32 %v1193, %v1200
  %v1202 = vmul.f32 %v1194, %v1200
  %v1203 = vmul.f32 %v1195, %v1200
  %v1204 = vmul.f32 %v1196, %v1200
  %v1205 = vlaneseq
  %v1206 = vshrl.u32 %v1205, 7
  %v1207 = vsub.s32 0, %v1206
  %v1208 = vrot.slane %v1144, %v1207
  %v1209 = vadd.f32 %v1201, %v1208
  %v1210 = vadd.f32 %v1202, %v1208
  %v1211 = vadd.f32 %v1203, %v1208
  %v1212 = vadd.f32 %v1204, %v1208
  %v1213 = vpack.c.bf16 %v1210, %v1209
  %v1214 = vpack.c.bf16 %v1212, %v1211
  %s1215 = scalar_lea.vmem %s1, 48
  %v1216 = vld [vmem:[%s1215] sm:$0xf]
  %v1217 = vld [vmem:[%s1215 + $0x4] sm:$0xf]
  %v1218 = vld [vmem:[%s1215 + $0x8] sm:$0xf]
  %v1219 = vld [vmem:[%s1215 + $0xc] sm:$0xf]
  %v1220 = vld [vmem:[%s3 + $0xa] sm:$0x1]
  %v1221 = vlaneseq
  %v1222 = vshrl.u32 %v1221, 7
  %v1223 = vsub.s32 0, %v1222
  %v1224 = vrot.slane %v1220, %v1223
  %v1229 = vunpack.c.l.b16 %v1216
  %v1230 = vunpack.c.l.b16 %v1217
  %v1231 = vunpack.c.l.b16 %v1218
  %v1232 = vunpack.c.l.b16 %v1219
  %v1233 = vpack.c.b16 %v1230, %v1229
  %v1234 = vpack.c.b16 %v1232, %v1231
  %v1238 = vsel %vm174, %v1213, 0
  %v1241 = vsel %vm174, %v1214, 0
  %1243 = vmatprep.subr.bf16.mxu0 0
  %1244 = vmatpush1.bf16.msra.mxu0 %v1233
  %1245 = vmatprep.subr.bf16.mxu0 0
  %1246 = vmatpush1.bf16.msra.mxu0 %v1234
  %1247 = vmatprep.subr.bf16.mxu0 0
  %1248 = vmatpush1.bf16.msra.mxu0 0
  %1249 = vmatprep.subr.bf16.mxu0 0
  %1250 = vmatpush1.bf16.msra.mxu0 0
  %1251 = vmatprep.subr.bf16.mxu0 0
  %1252 = vmatpush1.bf16.msra.mxu0 0
  %1253 = vmatprep.subr.bf16.mxu0 0
  %1254 = vmatpush1.bf16.msra.mxu0 0
  %1255 = vmatprep.subr.bf16.mxu0 0
  %1256 = vmatpush1.bf16.msra.mxu0 0
  %1257 = vmatprep.subr.bf16.mxu0 0
  %1258 = vmatpush1.bf16.msra.mxu0 0
  %1259 = vmatprep.subr.bf16.mxu0 0
  %1260 = vmatpush1.bf16.msra.mxu0 0
  %1261 = vmatprep.subr.bf16.mxu0 0
  %1262 = vmatpush1.bf16.msra.mxu0 0
  %1263 = vmatprep.subr.bf16.mxu0 0
  %1264 = vmatpush1.bf16.msra.mxu0 0
  %1265 = vmatprep.subr.bf16.mxu0 0
  %1266 = vmatpush1.bf16.msra.mxu0 0
  %1267 = vmatprep.subr.bf16.mxu0 0
  %1268 = vmatpush1.bf16.msra.mxu0 0
  %1269 = vmatprep.subr.bf16.mxu0 0
  %1270 = vmatpush1.bf16.msra.mxu0 0
  %1271 = vmatprep.subr.bf16.mxu0 0
  %1272 = vmatpush1.bf16.msra.mxu0 0
  %1273 = vmatprep.subr.bf16.mxu0 0
  %1274 = vmatpush1.bf16.msra.mxu0 0
  %1275 = vmatprep.mubr.bf16.mxu0 0
  %1276 = vmatmul.mubr.bf16.gmra.mrb[0].mxu0 %v1238
  %v1277 = vpop.f32.mrb[0].mxu0
  %v1278 = vadd.f32 %v1224, %v1277
  %v1279 = vpop.f32.mrb[0].mxu0
  %v1280 = vpop.f32.mrb[0].mxu0
  %v1281 = vadd.f32 %v1224, %v1280
  %v1282 = vpop.f32.mrb[0].mxu0
  %1283 = vmatprep.mubr.bf16.mxu0 0
  %1284 = vmatmul.mubr.bf16.gmra.mrb[0].mxu0 %v1241
  %v1285 = vpop.f32.mrb[0].mxu0
  %v1286 = vadd.f32 %v1224, %v1285
  %v1287 = vpop.f32.mrb[0].mxu0
  %v1288 = vpop.f32.mrb[0].mxu0
  %v1289 = vadd.f32 %v1224, %v1288
  %v1290 = vpop.f32.mrb[0].mxu0
  %1291 = vdwg.mxu0
  %v1292 = vpack.c.bf16 %v1281, %v1278
  %v1293 = vpack.c.bf16 %v1289, %v1286
  %1298 = vrot.lane.b32.xlu0 %v1278, 96
  %v1299 = vpop.permute.xlu0 %1298
  %1300 = vrot.lane.b32.xlu0 %v1281, 96
  %v1301 = vpop.permute.xlu0 %1300
  %1302 = vrot.lane.b32.xlu0 %v1286, 96
  %v1303 = vpop.permute.xlu0 %1302
  %1304 = vrot.lane.b32.xlu0 %v1289, 96
  %v1305 = vpop.permute.xlu0 %1304
  %1310 = vxpose.xlu0.b32.start [1/16] %v1299, 128
  %1311 = vxpose.xlu0.b32.cont [2/16] %v1301, 128
  %1312 = vxpose.xlu0.b32.cont [3/16] %v1303, 128
  %1313 = vxpose.xlu0.b32.cont [4/16] %v1305, 128
  %1314 = vxpose.xlu0.b32.cont [5/16] 0.0, 128
  %1315 = vxpose.xlu0.b32.cont [6/16] 0.0, 128
  %1316 = vxpose.xlu0.b32.cont [7/16] 0.0, 128
  %1317 = vxpose.xlu0.b32.cont [8/16] 0.0, 128
  %1318 = vxpose.xlu0.b32.cont [9/16] 0.0, 128
  %1319 = vxpose.xlu0.b32.cont [10/16] 0.0, 128
  %1320 = vxpose.xlu0.b32.cont [11/16] 0.0, 128
  %1321 = vxpose.xlu0.b32.cont [12/16] 0.0, 128
  %1322 = vxpose.xlu0.b32.cont [13/16] 0.0, 128
  %1323 = vxpose.xlu0.b32.cont [14/16] 0.0, 128
  %1324 = vxpose.xlu0.b32.cont [15/16] 0.0, 128
  %1325 = vxpose.xlu0.b32.end [16/16] 0.0, 128
  %v1326 = vpop.trf.xlu0
  %v1327 = vpop.trf.xlu0
  %v1328 = vpop.trf.xlu0
  %v1329 = vpop.trf.xlu0
  %v1330 = vpop.trf.xlu0
  %v1331 = vpop.trf.xlu0
  %v1332 = vpop.trf.xlu0
  %v1333 = vpop.trf.xlu0
  %v1334 = vpop.trf.xlu0
  %v1335 = vpop.trf.xlu0
  %v1336 = vpop.trf.xlu0
  %v1337 = vpop.trf.xlu0
  %v1338 = vpop.trf.xlu0
  %v1339 = vpop.trf.xlu0
  %v1340 = vpop.trf.xlu0
  %v1341 = vpop.trf.xlu0
  %1346 = vrot.lane.b32.xlu0 %v1326, 32
  %v1347 = vpop.permute.xlu0 %1346
  %1348 = vrot.lane.b32.xlu0 %v1327, 32
  %v1349 = vpop.permute.xlu0 %1348
  %1350 = vrot.lane.b32.xlu0 %v1328, 32
  %v1351 = vpop.permute.xlu0 %1350
  %1352 = vrot.lane.b32.xlu0 %v1329, 32
  %v1353 = vpop.permute.xlu0 %1352
  %1358 = vrot.lane.b32.xlu0 %v1326, 64
  %v1359 = vpop.permute.xlu0 %1358
  %1360 = vrot.lane.b32.xlu0 %v1327, 64
  %v1361 = vpop.permute.xlu0 %1360
  %1362 = vrot.lane.b32.xlu0 %v1328, 64
  %v1363 = vpop.permute.xlu0 %1362
  %1364 = vrot.lane.b32.xlu0 %v1329, 64
  %v1365 = vpop.permute.xlu0 %1364
  %1370 = vrot.lane.b32.xlu0 %v1326, 96
  %v1371 = vpop.permute.xlu0 %1370
  %1372 = vrot.lane.b32.xlu0 %v1327, 96
  %v1373 = vpop.permute.xlu0 %1372
  %1374 = vrot.lane.b32.xlu0 %v1328, 96
  %v1375 = vpop.permute.xlu0 %1374
  %1376 = vrot.lane.b32.xlu0 %v1329, 96
  %v1377 = vpop.permute.xlu0 %1376
  %v1382 = vsel %vm174, %v1326, %v1347
  %v1383 = vsel %vm174, %v1327, %v1349
  %v1384 = vsel %vm174, %v1328, %v1351
  %v1385 = vsel %vm174, %v1329, %v1353
  %v1386 = vsel %vm416, %v1382, %v1359
  %v1387 = vsel %vm416, %v1383, %v1361
  %v1388 = vsel %vm416, %v1384, %v1363
  %v1389 = vsel %vm416, %v1385, %v1365
  %v1390 = vsel %vm421, %v1386, %v1371
  %v1391 = vsel %vm421, %v1387, %v1373
  %v1392 = vsel %vm421, %v1388, %v1375
  %v1393 = vsel %vm421, %v1389, %v1377
  %v1394 = vmul.f32 %v1390, %v25
  %v1395 = vmul.f32 %v1391, %v26
  %v1396 = vmul.f32 %v1392, %v27
  %v1397 = vmul.f32 %v1393, %v28
  %v1398 = vpack.c.bf16 %v1395, %v1394
  %v1399 = vpack.c.bf16 %v1397, %v1396
  %v1400 = vmul.f32 %v1278, %v449
  %v1401 = vmul.f32 %v1281, %v451
  %v1402 = vmul.f32 %v1286, %v453
  %v1403 = vmul.f32 %v1289, %v455
  %v1404 = vmul.f32 %v1278, %v457
  %v1405 = vmul.f32 %v1281, %v459
  %v1406 = vmul.f32 %v1286, %v461
  %v1407 = vmul.f32 %v1289, %v463
  %v1408 = vmul.f32 %v1278, %v465
  %v1409 = vmul.f32 %v1281, %v467
  %v1410 = vmul.f32 %v1286, %v469
  %v1411 = vmul.f32 %v1289, %v471
  %v1412 = vmul.f32 %v1278, %v473
  %v1413 = vmul.f32 %v1281, %v475
  %v1414 = vmul.f32 %v1286, %v477
  %v1415 = vmul.f32 %v1289, %v479
  %v1416 = vpack.c.bf16 %v1401, %v1400
  %v1417 = vpack.c.bf16 %v1403, %v1402
  %v1418 = vpack.c.bf16 %v1405, %v1404
  %v1419 = vpack.c.bf16 %v1407, %v1406
  %v1420 = vpack.c.bf16 %v1409, %v1408
  %v1421 = vpack.c.bf16 %v1411, %v1410
  %v1422 = vpack.c.bf16 %v1413, %v1412
  %v1423 = vpack.c.bf16 %v1415, %v1414
  %v1425 = vsel %vm174, %v1292, 0
  %v1428 = vsel %vm174, %v1293, 0
  %1430 = vmatprep.subr.bf16.mxu0 0
  %1431 = vmatpush1.bf16.msra.mxu0 %v1398
  %1432 = vmatprep.subr.bf16.mxu0 0
  %1433 = vmatpush1.bf16.msra.mxu0 %v1399
  %1434 = vmatprep.subr.bf16.mxu0 0
  %1435 = vmatpush1.bf16.msra.mxu0 0
  %1436 = vmatprep.subr.bf16.mxu0 0
  %1437 = vmatpush1.bf16.msra.mxu0 0
  %1438 = vmatprep.subr.bf16.mxu0 0
  %1439 = vmatpush1.bf16.msra.mxu0 0
  %1440 = vmatprep.subr.bf16.mxu0 0
  %1441 = vmatpush1.bf16.msra.mxu0 0
  %1442 = vmatprep.subr.bf16.mxu0 0
  %1443 = vmatpush1.bf16.msra.mxu0 0
  %1444 = vmatprep.subr.bf16.mxu0 0
  %1445 = vmatpush1.bf16.msra.mxu0 0
  %1446 = vmatprep.subr.bf16.mxu0 0
  %1447 = vmatpush1.bf16.msra.mxu0 0
  %1448 = vmatprep.subr.bf16.mxu0 0
  %1449 = vmatpush1.bf16.msra.mxu0 0
  %1450 = vmatprep.subr.bf16.mxu0 0
  %1451 = vmatpush1.bf16.msra.mxu0 0
  %1452 = vmatprep.subr.bf16.mxu0 0
  %1453 = vmatpush1.bf16.msra.mxu0 0
  %1454 = vmatprep.subr.bf16.mxu0 0
  %1455 = vmatpush1.bf16.msra.mxu0 0
  %1456 = vmatprep.subr.bf16.mxu0 0
  %1457 = vmatpush1.bf16.msra.mxu0 0
  %1458 = vmatprep.subr.bf16.mxu0 0
  %1459 = vmatpush1.bf16.msra.mxu0 0
  %1460 = vmatprep.subr.bf16.mxu0 0
  %1461 = vmatpush1.bf16.msra.mxu0 0
  %1462 = vmatprep.mubr.bf16.mxu0 0
  %1463 = vmatmul.mubr.bf16.gmra.mrb[0].mxu0 %v1425
  %v1464 = vpop.f32.mrb[0].mxu0
  %v1465 = vadd.f32 %v33, %v1464
  %v1466 = vpop.f32.mrb[0].mxu0
  %v1467 = vpop.f32.mrb[0].mxu0
  %v1468 = vadd.f32 %v34, %v1467
  %v1469 = vpop.f32.mrb[0].mxu0
  %1470 = vmatprep.mubr.bf16.mxu0 0
  %1471 = vmatmul.mubr.bf16.gmra.mrb[0].mxu0 %v1428
  %v1472 = vpop.f32.mrb[0].mxu0
  %v1473 = vadd.f32 %v35, %v1472
  %v1474 = vpop.f32.mrb[0].mxu0
  %v1475 = vpop.f32.mrb[0].mxu0
  %v1476 = vadd.f32 %v36, %v1475
  %v1477 = vpop.f32.mrb[0].mxu0
  %1478 = vdwg.mxu0
  %1479 = vmax.xlane.f32.xlu0 %v1465
  %v1480 = vpop.xlane.xlu0 %1479
  %1481 = vmax.xlane.f32.xlu0 %v1468
  %v1482 = vpop.xlane.xlu0 %1481
  %1483 = vmax.xlane.f32.xlu0 %v1473
  %v1484 = vpop.xlane.xlu0 %1483
  %1485 = vmax.xlane.f32.xlu0 %v1476
  %v1486 = vpop.xlane.xlu0 %1485
  %v1487 = vsub.f32 %v1465, %v1480
  %v1488 = vsub.f32 %v1468, %v1482
  %v1489 = vsub.f32 %v1473, %v1484
  %v1490 = vsub.f32 %v1476, %v1486
  %v1491 = vmul.f32 %v1487, 1.442695
  %v1492 = vpow.pop %v1491
  %v1493 = vmul.f32 %v1488, 1.442695
  %v1494 = vpow.pop %v1493
  %v1495 = vmul.f32 %v1489, 1.442695
  %v1496 = vpow.pop %v1495
  %v1497 = vmul.f32 %v1490, 1.442695
  %v1498 = vpow.pop %v1497
  %v1499 = vpack.c.bf16 %v1494, %v1492
  %v1500 = vpack.c.bf16 %v1498, %v1496
  %1509 = vrot.lane.b32.xlu0 %v1416, 64
  %v1510 = vpop.permute.xlu0 %1509
  %1511 = vrot.lane.b32.xlu0 %v1417, 64
  %v1512 = vpop.permute.xlu0 %1511
  %1513 = vrot.lane.b32.xlu0 %v1418, 64
  %v1514 = vpop.permute.xlu0 %1513
  %1515 = vrot.lane.b32.xlu0 %v1419, 64
  %v1516 = vpop.permute.xlu0 %1515
  %1517 = vrot.lane.b32.xlu0 %v1420, 64
  %v1518 = vpop.permute.xlu0 %1517
  %1519 = vrot.lane.b32.xlu0 %v1421, 64
  %v1520 = vpop.permute.xlu0 %1519
  %1521 = vrot.lane.b32.xlu0 %v1422, 64
  %v1522 = vpop.permute.xlu0 %1521
  %1523 = vrot.lane.b32.xlu0 %v1423, 64
  %v1524 = vpop.permute.xlu0 %1523
  %1533 = vmatprep.subr.bf16.mxu0 0
  %1534 = vmatpush1.bf16.msra.mxu0 %v1510
  %1535 = vmatprep.subr.bf16.mxu0 0
  %1536 = vmatpush1.bf16.msra.mxu0 %v1512
  %1537 = vmatprep.subr.bf16.mxu0 0
  %1538 = vmatpush1.bf16.msra.mxu0 %v1514
  %1539 = vmatprep.subr.bf16.mxu0 0
  %1540 = vmatpush1.bf16.msra.mxu0 %v1516
  %1541 = vmatprep.subr.bf16.mxu0 0
  %1542 = vmatpush1.bf16.msra.mxu0 %v1518
  %1543 = vmatprep.subr.bf16.mxu0 0
  %1544 = vmatpush1.bf16.msra.mxu0 %v1520
  %1545 = vmatprep.subr.bf16.mxu0 0
  %1546 = vmatpush1.bf16.msra.mxu0 %v1522
  %1547 = vmatprep.subr.bf16.mxu0 0
  %1548 = vmatpush1.bf16.msra.mxu0 %v1524
  %1549 = vmatprep.subr.bf16.mxu0 0
  %1550 = vmatpush1.bf16.msra.mxu0 0
  %1551 = vmatprep.subr.bf16.mxu0 0
  %1552 = vmatpush1.bf16.msra.mxu0 0
  %1553 = vmatprep.subr.bf16.mxu0 0
  %1554 = vmatpush1.bf16.msra.mxu0 0
  %1555 = vmatprep.subr.bf16.mxu0 0
  %1556 = vmatpush1.bf16.msra.mxu0 0
  %1557 = vmatprep.subr.bf16.mxu0 0
  %1558 = vmatpush1.bf16.msra.mxu0 0
  %1559 = vmatprep.subr.bf16.mxu0 0
  %1560 = vmatpush1.bf16.msra.mxu0 0
  %1561 = vmatprep.subr.bf16.mxu0 0
  %1562 = vmatpush1.bf16.msra.mxu0 0
  %1563 = vmatprep.subr.bf16.mxu0 0
  %1564 = vmatpush1.bf16.msra.mxu0 0
  %1565 = vmatprep.mubr.bf16.mxu0 0
  %1566 = vmatmul.mubr.bf16.gmra.mrb[0].mxu0 %v1499
  %v1567 = vpop.f32.mrb[0].mxu0
  %v1568 = vadd.f32 0.0, %v1567
  %v1569 = vpop.f32.mrb[0].mxu0
  %v1570 = vpop.f32.mrb[0].mxu0
  %v1571 = vadd.f32 0.0, %v1570
  %v1572 = vpop.f32.mrb[0].mxu0
  %1573 = vmatprep.mubr.bf16.mxu0 0
  %1574 = vmatmul.mubr.bf16.gmra.mrb[0].mxu0 %v1500
  %v1575 = vpop.f32.mrb[0].mxu0
  %v1576 = vadd.f32 0.0, %v1575
  %v1577 = vpop.f32.mrb[0].mxu0
  %v1578 = vpop.f32.mrb[0].mxu0
  %v1579 = vadd.f32 0.0, %v1578
  %v1580 = vpop.f32.mrb[0].mxu0
  %1581 = vdwg.mxu0
  %1582 = vmatprep.subr.bf16.mxu0 0
  %1583 = vmatpush1.bf16.msra.mxu0 %v710
  %1584 = vmatprep.subr.bf16.mxu0 0
  %1585 = vmatpush1.bf16.msra.mxu0 %v711
  %1586 = vmatprep.subr.bf16.mxu0 0
  %1587 = vmatpush1.bf16.msra.mxu0 %v712
  %1588 = vmatprep.subr.bf16.mxu0 0
  %1589 = vmatpush1.bf16.msra.mxu0 %v713
  %1590 = vmatprep.subr.bf16.mxu0 0
  %1591 = vmatpush1.bf16.msra.mxu0 %v714
  %1592 = vmatprep.subr.bf16.mxu0 0
  %1593 = vmatpush1.bf16.msra.mxu0 %v715
  %1594 = vmatprep.subr.bf16.mxu0 0
  %1595 = vmatpush1.bf16.msra.mxu0 %v716
  %1596 = vmatprep.subr.bf16.mxu0 0
  %1597 = vmatpush1.bf16.msra.mxu0 %v717
  %1598 = vmatprep.subr.bf16.mxu0 0
  %1599 = vmatpush1.bf16.msra.mxu0 0
  %1600 = vmatprep.subr.bf16.mxu0 0
  %1601 = vmatpush1.bf16.msra.mxu0 0
  %1602 = vmatprep.subr.bf16.mxu0 0
  %1603 = vmatpush1.bf16.msra.mxu0 0
  %1604 = vmatprep.subr.bf16.mxu0 0
  %1605 = vmatpush1.bf16.msra.mxu0 0
  %1606 = vmatprep.subr.bf16.mxu0 0
  %1607 = vmatpush1.bf16.msra.mxu0 0
  %1608 = vmatprep.subr.bf16.mxu0 0
  %1609 = vmatpush1.bf16.msra.mxu0 0
  %1610 = vmatprep.subr.bf16.mxu0 0
  %1611 = vmatpush1.bf16.msra.mxu0 0
  %1612 = vmatprep.subr.bf16.mxu0 0
  %1613 = vmatpush1.bf16.msra.mxu0 0
  %1614 = vmatprep.mubr.bf16.mxu0 0
  %1615 = vmatmul.mubr.bf16.gmra.mrb[0].mxu0 %v1499
  %v1616 = vpop.f32.mrb[0].mxu0
  %v1617 = vadd.f32 0.0, %v1616
  %v1618 = vpop.f32.mrb[0].mxu0
  %v1619 = vpop.f32.mrb[0].mxu0
  %v1620 = vadd.f32 0.0, %v1619
  %v1621 = vpop.f32.mrb[0].mxu0
  %1622 = vmatprep.mubr.bf16.mxu0 0
  %1623 = vmatmul.mubr.bf16.gmra.mrb[0].mxu0 %v1500
  %v1624 = vpop.f32.mrb[0].mxu0
  %v1625 = vadd.f32 0.0, %v1624
  %v1626 = vpop.f32.mrb[0].mxu0
  %v1627 = vpop.f32.mrb[0].mxu0
  %v1628 = vadd.f32 0.0, %v1627
  %v1629 = vpop.f32.mrb[0].mxu0
  %1630 = vdwg.mxu0
  %v1631 = vrcp.pop %v1617
  %v1632 = vrcp.pop %v1620
  %v1633 = vrcp.pop %v1625
  %v1634 = vrcp.pop %v1628
  %v1635 = vmul.f32 %v1568, %v1631
  %v1636 = vmul.f32 %v1571, %v1632
  %v1637 = vmul.f32 %v1576, %v1633
  %v1638 = vmul.f32 %v1579, %v1634
  %v1639 = vpack.c.bf16 %v1636, %v1635
  %v1640 = vpack.c.bf16 %v1638, %v1637
  %s1641 = scalar_lea.vmem %s1, 64
  %v1642 = vld [vmem:[%s1641] sm:$0xf]
  %v1643 = vld [vmem:[%s1641 + $0x4] sm:$0xf]
  %v1644 = vld [vmem:[%s1641 + $0x8] sm:$0xf]
  %v1645 = vld [vmem:[%s1641 + $0xc] sm:$0xf]
  %v1646 = vld [vmem:[%s3 + $0xb] sm:$0x1]
  %v1647 = vlaneseq
  %v1648 = vshrl.u32 %v1647, 7
  %v1649 = vsub.s32 0, %v1648
  %v1650 = vrot.slane %v1646, %v1649
  %v1655 = vunpack.c.l.b16 %v1642
  %v1656 = vunpack.c.l.b16 %v1643
  %v1657 = vunpack.c.l.b16 %v1644
  %v1658 = vunpack.c.l.b16 %v1645
  %v1659 = vpack.c.b16 %v1656, %v1655
  %v1660 = vpack.c.b16 %v1658, %v1657
  %v1664 = vsel %vm174, %v1639, 0
  %v1667 = vsel %vm174, %v1640, 0
  %1669 = vmatprep.subr.bf16.mxu0 0
  %1670 = vmatpush1.bf16.msra.mxu0 %v1659
  %1671 = vmatprep.subr.bf16.mxu0 0
  %1672 = vmatpush1.bf16.msra.mxu0 %v1660
  %1673 = vmatprep.subr.bf16.mxu0 0
  %1674 = vmatpush1.bf16.msra.mxu0 0
  %1675 = vmatprep.subr.bf16.mxu0 0
  %1676 = vmatpush1.bf16.msra.mxu0 0
  %1677 = vmatprep.subr.bf16.mxu0 0
  %1678 = vmatpush1.bf16.msra.mxu0 0
  %1679 = vmatprep.subr.bf16.mxu0 0
  %1680 = vmatpush1.bf16.msra.mxu0 0
  %1681 = vmatprep.subr.bf16.mxu0 0
  %1682 = vmatpush1.bf16.msra.mxu0 0
  %1683 = vmatprep.subr.bf16.mxu0 0
  %1684 = vmatpush1.bf16.msra.mxu0 0
  %1685 = vmatprep.subr.bf16.mxu0 0
  %1686 = vmatpush1.bf16.msra.mxu0 0
  %1687 = vmatprep.subr.bf16.mxu0 0
  %1688 = vmatpush1.bf16.msra.mxu0 0
  %1689 = vmatprep.subr.bf16.mxu0 0
  %1690 = vmatpush1.bf16.msra.mxu0 0
  %1691 = vmatprep.subr.bf16.mxu0 0
  %1692 = vmatpush1.bf16.msra.mxu0 0
  %1693 = vmatprep.subr.bf16.mxu0 0
  %1694 = vmatpush1.bf16.msra.mxu0 0
  %1695 = vmatprep.subr.bf16.mxu0 0
  %1696 = vmatpush1.bf16.msra.mxu0 0
  %1697 = vmatprep.subr.bf16.mxu0 0
  %1698 = vmatpush1.bf16.msra.mxu0 0
  %1699 = vmatprep.subr.bf16.mxu0 0
  %1700 = vmatpush1.bf16.msra.mxu0 0
  %1701 = vmatprep.mubr.bf16.mxu0 0
  %1702 = vmatmul.mubr.bf16.gmra.mrb[0].mxu0 %v1664
  %v1703 = vpop.f32.mrb[0].mxu0
  %v1704 = vadd.f32 %v1650, %v1703
  %v1705 = vpop.f32.mrb[0].mxu0
  %v1706 = vpop.f32.mrb[0].mxu0
  %v1707 = vadd.f32 %v1650, %v1706
  %v1708 = vpop.f32.mrb[0].mxu0
  %1709 = vmatprep.mubr.bf16.mxu0 0
  %1710 = vmatmul.mubr.bf16.gmra.mrb[0].mxu0 %v1667
  %v1711 = vpop.f32.mrb[0].mxu0
  %v1712 = vadd.f32 %v1650, %v1711
  %v1713 = vpop.f32.mrb[0].mxu0
  %v1714 = vpop.f32.mrb[0].mxu0
  %v1715 = vadd.f32 %v1650, %v1714
  %v1716 = vpop.f32.mrb[0].mxu0
  %1717 = vdwg.mxu0
  %v1718 = vadd.f32 %v1139, %v1704
  %v1719 = vadd.f32 %v1140, %v1707
  %v1720 = vadd.f32 %v1141, %v1712
  %v1721 = vadd.f32 %v1142, %v1715
  %v1722 = vld [vmem:[%s3 + $0xc] sm:$0x1]
  %v1723 = vld [vmem:[%s3 + $0xd] sm:$0x1]
  %v1724 = vsel %vm174, %v1718, 0.0
  %1725 = vadd.xlane.f32.xlu0 %v1724
  %v1726 = vpop.xlane.xlu0 %1725
  %v1727 = vsel %vm174, %v1719, 0.0
  %1728 = vadd.xlane.f32.xlu0 %v1727
  %v1729 = vpop.xlane.xlu0 %1728
  %v1730 = vsel %vm174, %v1720, 0.0
  %1731 = vadd.xlane.f32.xlu0 %v1730
  %v1732 = vpop.xlane.xlu0 %1731
  %v1733 = vsel %vm174, %v1721, 0.0
  %1734 = vadd.xlane.f32.xlu0 %v1733
  %v1735 = vpop.xlane.xlu0 %1734
  %v1736 = vmul.f32 %v1726, %v187
  %v1737 = vmul.f32 %v1729, %v187
  %v1738 = vmul.f32 %v1732, %v187
  %v1739 = vmul.f32 %v1735, %v187
  %v1740 = vsub.f32 %v1718, %v1736
  %v1741 = vsub.f32 %v1719, %v1737
  %v1742 = vsub.f32 %v1720, %v1738
  %v1743 = vsub.f32 %v1721, %v1739
  %v1744 = vmul.f32 %v1740, %v1740
  %v1745 = vmul.f32 %v1741, %v1741
  %v1746 = vmul.f32 %v1742, %v1742
  %v1747 = vmul.f32 %v1743, %v1743
  %v1748 = vsel %vm174, %v1744, 0.0
  %1749 = vadd.xlane.f32.xlu0 %v1748
  %v1750 = vpop.xlane.xlu0 %1749
  %v1751 = vsel %vm174, %v1745, 0.0
  %1752 = vadd.xlane.f32.xlu0 %v1751
  %v1753 = vpop.xlane.xlu0 %1752
  %v1754 = vsel %vm174, %v1746, 0.0
  %1755 = vadd.xlane.f32.xlu0 %v1754
  %v1756 = vpop.xlane.xlu0 %1755
  %v1757 = vsel %vm174, %v1747, 0.0
  %1758 = vadd.xlane.f32.xlu0 %v1757
  %v1759 = vpop.xlane.xlu0 %1758
  %v1760 = vmul.f32 %v1750, %v187
  %v1761 = vmul.f32 %v1753, %v187
  %v1762 = vmul.f32 %v1756, %v187
  %v1763 = vmul.f32 %v1759, %v187
  %v1764 = vadd.f32 %v1760, 1e-05
  %v1765 = vadd.f32 %v1761, 1e-05
  %v1766 = vadd.f32 %v1762, 1e-05
  %v1767 = vadd.f32 %v1763, 1e-05
  %v1768 = vrsqrt.pop %v1764
  %v1769 = vrsqrt.pop %v1765
  %v1770 = vrsqrt.pop %v1766
  %v1771 = vrsqrt.pop %v1767
  %v1772 = vmul.f32 %v1740, %v1768
  %v1773 = vmul.f32 %v1741, %v1769
  %v1774 = vmul.f32 %v1742, %v1770
  %v1775 = vmul.f32 %v1743, %v1771
  %v1776 = vlaneseq
  %v1777 = vshrl.u32 %v1776, 7
  %v1778 = vsub.s32 0, %v1777
  %v1779 = vrot.slane %v1722, %v1778
  %v1780 = vmul.f32 %v1772, %v1779
  %v1781 = vmul.f32 %v1773, %v1779
  %v1782 = vmul.f32 %v1774, %v1779
  %v1783 = vmul.f32 %v1775, %v1779
  %v1784 = vlaneseq
  %v1785 = vshrl.u32 %v1784, 7
  %v1786 = vsub.s32 0, %v1785
  %v1787 = vrot.slane %v1723, %v1786
  %v1788 = vadd.f32 %v1780, %v1787
  %v1789 = vadd.f32 %v1781, %v1787
  %v1790 = vadd.f32 %v1782, %v1787
  %v1791 = vadd.f32 %v1783, %v1787
  %v1792 = vpack.c.bf16 %v1789, %v1788
  %v1793 = vpack.c.bf16 %v1791, %v1790
  %s1794 = scalar_lea.vmem %s1, 80
  %v1795 = vld [vmem:[%s1794] sm:$0xf]
  %v1796 = vld [vmem:[%s1794 + $0x4] sm:$0xf]
  %v1797 = vld [vmem:[%s1794 + $0x8] sm:$0xf]
  %v1798 = vld [vmem:[%s1794 + $0xc] sm:$0xf]
  %v1799 = vld [vmem:[%s3 + $0xe] sm:$0x1]
  %v1800 = vlaneseq
  %v1801 = vshrl.u32 %v1800, 7
  %v1802 = vsub.s32 0, %v1801
  %v1803 = vrot.slane %v1799, %v1802
  %v1808 = vunpack.c.l.b16 %v1795
  %v1809 = vunpack.c.l.b16 %v1796
  %v1810 = vunpack.c.l.b16 %v1797
  %v1811 = vunpack.c.l.b16 %v1798
  %v1812 = vpack.c.b16 %v1809, %v1808
  %v1813 = vpack.c.b16 %v1811, %v1810
  %v1817 = vsel %vm174, %v1792, 0
  %v1820 = vsel %vm174, %v1793, 0
  %1822 = vmatprep.subr.bf16.mxu0 0
  %1823 = vmatpush1.bf16.msra.mxu0 %v1812
  %1824 = vmatprep.subr.bf16.mxu0 0
  %1825 = vmatpush1.bf16.msra.mxu0 %v1813
  %1826 = vmatprep.subr.bf16.mxu0 0
  %1827 = vmatpush1.bf16.msra.mxu0 0
  %1828 = vmatprep.subr.bf16.mxu0 0
  %1829 = vmatpush1.bf16.msra.mxu0 0
  %1830 = vmatprep.subr.bf16.mxu0 0
  %1831 = vmatpush1.bf16.msra.mxu0 0
  %1832 = vmatprep.subr.bf16.mxu0 0
  %1833 = vmatpush1.bf16.msra.mxu0 0
  %1834 = vmatprep.subr.bf16.mxu0 0
  %1835 = vmatpush1.bf16.msra.mxu0 0
  %1836 = vmatprep.subr.bf16.mxu0 0
  %1837 = vmatpush1.bf16.msra.mxu0 0
  %1838 = vmatprep.subr.bf16.mxu0 0
  %1839 = vmatpush1.bf16.msra.mxu0 0
  %1840 = vmatprep.subr.bf16.mxu0 0
  %1841 = vmatpush1.bf16.msra.mxu0 0
  %1842 = vmatprep.subr.bf16.mxu0 0
  %1843 = vmatpush1.bf16.msra.mxu0 0
  %1844 = vmatprep.subr.bf16.mxu0 0
  %1845 = vmatpush1.bf16.msra.mxu0 0
  %1846 = vmatprep.subr.bf16.mxu0 0
  %1847 = vmatpush1.bf16.msra.mxu0 0
  %1848 = vmatprep.subr.bf16.mxu0 0
  %1849 = vmatpush1.bf16.msra.mxu0 0
  %1850 = vmatprep.subr.bf16.mxu0 0
  %1851 = vmatpush1.bf16.msra.mxu0 0
  %1852 = vmatprep.subr.bf16.mxu0 0
  %1853 = vmatpush1.bf16.msra.mxu0 0
  %1854 = vmatprep.mubr.bf16.mxu0 0
  %1855 = vmatmul.mubr.bf16.gmra.mrb[0].mxu0 %v1817
  %v1856 = vpop.f32.mrb[0].mxu0
  %v1857 = vadd.f32 %v1803, %v1856
  %v1858 = vpop.f32.mrb[0].mxu0
  %v1859 = vpop.f32.mrb[0].mxu0
  %v1860 = vadd.f32 %v1803, %v1859
  %v1861 = vpop.f32.mrb[0].mxu0
  %1862 = vmatprep.mubr.bf16.mxu0 0
  %1863 = vmatmul.mubr.bf16.gmra.mrb[0].mxu0 %v1820
  %v1864 = vpop.f32.mrb[0].mxu0
  %v1865 = vadd.f32 %v1803, %v1864
  %v1866 = vpop.f32.mrb[0].mxu0
  %v1867 = vpop.f32.mrb[0].mxu0
  %v1868 = vadd.f32 %v1803, %v1867
  %v1869 = vpop.f32.mrb[0].mxu0
  %1870 = vdwg.mxu0
  %v1871 = vmax.f32 %v1857, 0.0
  %v1872 = vmax.f32 %v1860, 0.0
  %v1873 = vmax.f32 %v1865, 0.0
  %v1874 = vmax.f32 %v1868, 0.0
  %v1875 = vpack.c.bf16 %v1872, %v1871
  %v1876 = vpack.c.bf16 %v1874, %v1873
  %s1877 = scalar_lea.vmem %s2, 64
  %v1878 = vld [vmem:[%s1877] sm:$0xf]
  %v1879 = vld [vmem:[%s1877 + $0x4] sm:$0xf]
  %v1880 = vld [vmem:[%s1877 + $0x8] sm:$0xf]
  %v1881 = vld [vmem:[%s1877 + $0xc] sm:$0xf]
  %v1882 = vld [vmem:[%s1877 + $0x10] sm:$0xf]
  %v1883 = vld [vmem:[%s1877 + $0x14] sm:$0xf]
  %v1884 = vld [vmem:[%s1877 + $0x18] sm:$0xf]
  %v1885 = vld [vmem:[%s1877 + $0x1c] sm:$0xf]
  %v1886 = vld [vmem:[%s1877 + $0x20] sm:$0xf]
  %v1887 = vld [vmem:[%s1877 + $0x24] sm:$0xf]
  %v1888 = vld [vmem:[%s1877 + $0x28] sm:$0xf]
  %v1889 = vld [vmem:[%s1877 + $0x2c] sm:$0xf]
  %v1890 = vld [vmem:[%s1877 + $0x30] sm:$0xf]
  %v1891 = vld [vmem:[%s1877 + $0x34] sm:$0xf]
  %v1892 = vld [vmem:[%s1877 + $0x38] sm:$0xf]
  %v1893 = vld [vmem:[%s1877 + $0x3c] sm:$0xf]
  %v1894 = vld [vmem:[%s3 + $0xf] sm:$0x1]
  %v1895 = vlaneseq
  %v1896 = vshrl.u32 %v1895, 7
  %v1897 = vsub.s32 0, %v1896
  %v1898 = vrot.slane %v1894, %v1897
  %v1915 = vunpack.c.l.b16 %v1878
  %v1916 = vunpack.c.l.b16 %v1879
  %v1917 = vunpack.c.l.b16 %v1880
  %v1918 = vunpack.c.l.b16 %v1881
  %v1919 = vunpack.c.l.b16 %v1882
  %v1920 = vunpack.c.l.b16 %v1883
  %v1921 = vunpack.c.l.b16 %v1884
  %v1922 = vunpack.c.l.b16 %v1885
  %v1923 = vunpack.c.l.b16 %v1886
  %v1924 = vunpack.c.l.b16 %v1887
  %v1925 = vunpack.c.l.b16 %v1888
  %v1926 = vunpack.c.l.b16 %v1889
  %v1927 = vunpack.c.l.b16 %v1890
  %v1928 = vunpack.c.l.b16 %v1891
  %v1929 = vunpack.c.l.b16 %v1892
  %v1930 = vunpack.c.l.b16 %v1893
  %v1931 = vpack.c.b16 %v1916, %v1915
  %v1932 = vpack.c.b16 %v1918, %v1917
  %v1933 = vpack.c.b16 %v1920, %v1919
  %v1934 = vpack.c.b16 %v1922, %v1921
  %v1935 = vpack.c.b16 %v1924, %v1923
  %v1936 = vpack.c.b16 %v1926, %v1925
  %v1937 = vpack.c.b16 %v1928, %v1927
  %v1938 = vpack.c.b16 %v1930, %v1929
  %1947 = vmatprep.subr.bf16.mxu0 0
  %1948 = vmatpush1.bf16.msra.mxu0 %v1931
  %1949 = vmatprep.subr.bf16.mxu0 0
  %1950 = vmatpush1.bf16.msra.mxu0 %v1932
  %1951 = vmatprep.subr.bf16.mxu0 0
  %1952 = vmatpush1.bf16.msra.mxu0 %v1933
  %1953 = vmatprep.subr.bf16.mxu0 0
  %1954 = vmatpush1.bf16.msra.mxu0 %v1934
  %1955 = vmatprep.subr.bf16.mxu0 0
  %1956 = vmatpush1.bf16.msra.mxu0 %v1935
  %1957 = vmatprep.subr.bf16.mxu0 0
  %1958 = vmatpush1.bf16.msra.mxu0 %v1936
  %1959 = vmatprep.subr.bf16.mxu0 0
  %1960 = vmatpush1.bf16.msra.mxu0 %v1937
  %1961 = vmatprep.subr.bf16.mxu0 0
  %1962 = vmatpush1.bf16.msra.mxu0 %v1938
  %1963 = vmatprep.subr.bf16.mxu0 0
  %1964 = vmatpush1.bf16.msra.mxu0 0
  %1965 = vmatprep.subr.bf16.mxu0 0
  %1966 = vmatpush1.bf16.msra.mxu0 0
  %1967 = vmatprep.subr.bf16.mxu0 0
  %1968 = vmatpush1.bf16.msra.mxu0 0
  %1969 = vmatprep.subr.bf16.mxu0 0
  %1970 = vmatpush1.bf16.msra.mxu0 0
  %1971 = vmatprep.subr.bf16.mxu0 0
  %1972 = vmatpush1.bf16.msra.mxu0 0
  %1973 = vmatprep.subr.bf16.mxu0 0
  %1974 = vmatpush1.bf16.msra.mxu0 0
  %1975 = vmatprep.subr.bf16.mxu0 0
  %1976 = vmatpush1.bf16.msra.mxu0 0
  %1977 = vmatprep.subr.bf16.mxu0 0
  %1978 = vmatpush1.bf16.msra.mxu0 0
  %1979 = vmatprep.mubr.bf16.mxu0 0
  %1980 = vmatmul.mubr.bf16.gmra.mrb[0].mxu0 %v1875
  %v1981 = vpop.f32.mrb[0].mxu0
  %v1982 = vadd.f32 %v1898, %v1981
  %v1983 = vpop.f32.mrb[0].mxu0
  %v1984 = vpop.f32.mrb[0].mxu0
  %v1985 = vadd.f32 %v1898, %v1984
  %v1986 = vpop.f32.mrb[0].mxu0
  %1987 = vmatprep.mubr.bf16.mxu0 0
  %1988 = vmatmul.mubr.bf16.gmra.mrb[0].mxu0 %v1876
  %v1989 = vpop.f32.mrb[0].mxu0
  %v1990 = vadd.f32 %v1898, %v1989
  %v1991 = vpop.f32.mrb[0].mxu0
  %v1992 = vpop.f32.mrb[0].mxu0
  %v1993 = vadd.f32 %v1898, %v1992
  %v1994 = vpop.f32.mrb[0].mxu0
  %1995 = vdwg.mxu0
  %v1996 = vadd.f32 %v1718, %v1982
  %v1997 = vadd.f32 %v1719, %v1985
  %v1998 = vadd.f32 %v1720, %v1990
  %v1999 = vadd.f32 %v1721, %v1993
  %v2000 = vpack.c.bf16 %v1997, %v1996
  %v2001 = vpack.c.bf16 %v1999, %v1998
  %v2003 = vsel %vm174, %v37, 0
  %2005 = vmatprep.subr.bf16.mxu0 0
  %2006 = vmatpush1.bf16.msra.mxu0 %v2000
  %2007 = vmatprep.subr.bf16.mxu0 0
  %2008 = vmatpush1.bf16.msra.mxu0 %v2001
  %2009 = vmatprep.subr.bf16.mxu0 0
  %2010 = vmatpush1.bf16.msra.mxu0 0
  %2011 = vmatprep.subr.bf16.mxu0 0
  %2012 = vmatpush1.bf16.msra.mxu0 0
  %2013 = vmatprep.subr.bf16.mxu0 0
  %2014 = vmatpush1.bf16.msra.mxu0 0
  %2015 = vmatprep.subr.bf16.mxu0 0
  %2016 = vmatpush1.bf16.msra.mxu0 0
  %2017 = vmatprep.subr.bf16.mxu0 0
  %2018 = vmatpush1.bf16.msra.mxu0 0
  %2019 = vmatprep.subr.bf16.mxu0 0
  %2020 = vmatpush1.bf16.msra.mxu0 0
  %2021 = vmatprep.subr.bf16.mxu0 0
  %2022 = vmatpush1.bf16.msra.mxu0 0
  %2023 = vmatprep.subr.bf16.mxu0 0
  %2024 = vmatpush1.bf16.msra.mxu0 0
  %2025 = vmatprep.subr.bf16.mxu0 0
  %2026 = vmatpush1.bf16.msra.mxu0 0
  %2027 = vmatprep.subr.bf16.mxu0 0
  %2028 = vmatpush1.bf16.msra.mxu0 0
  %2029 = vmatprep.subr.bf16.mxu0 0
  %2030 = vmatpush1.bf16.msra.mxu0 0
  %2031 = vmatprep.subr.bf16.mxu0 0
  %2032 = vmatpush1.bf16.msra.mxu0 0
  %2033 = vmatprep.subr.bf16.mxu0 0
  %2034 = vmatpush1.bf16.msra.mxu0 0
  %2035 = vmatprep.subr.bf16.mxu0 0
  %2036 = vmatpush1.bf16.msra.mxu0 0
  %2037 = vmatprep.mubr.bf16.mxu0 0
  %2038 = vmatmul.mubr.bf16.gmra.mrb[0].mxu0 %v2003
  %v2039 = vpop.f32.mrb[0].mxu0
  %v2040 = vadd.f32 0.0, %v2039
  %v2041 = vpop.f32.mrb[0].mxu0
  %v2042 = vpop.f32.mrb[0].mxu0
  %v2043 = vpop.f32.mrb[0].mxu0
  %2044 = vdwg.mxu0
  %v2045 = vpack.c.bf16 %v2040, %v2040
  %s2046 = scalar_lea.vmem %s1, 96
  %v2047 = vld [vmem:[%s2046] sm:$0xf]
  %v2048 = vld [vmem:[%s2046 + $0x4] sm:$0xf]
  %v2049 = vld [vmem:[%s2046 + $0x8] sm:$0xf]
  %v2050 = vld [vmem:[%s2046 + $0xc] sm:$0xf]
  %v2051 = vld [vmem:[%s3 + $0x10] sm:$0x1]
  %v2052 = vlaneseq
  %v2053 = vshrl.u32 %v2052, 7
  %v2054 = vsub.s32 0, %v2053
  %v2055 = vrot.slane %v2051, %v2054
  %v2060 = vunpack.c.l.b16 %v2047
  %v2061 = vunpack.c.l.b16 %v2048
  %v2062 = vunpack.c.l.b16 %v2049
  %v2063 = vunpack.c.l.b16 %v2050
  %v2064 = vpack.c.b16 %v2061, %v2060
  %v2065 = vpack.c.b16 %v2063, %v2062
  %v2069 = vsel %vm174, %v2045, 0
  %2071 = vmatprep.subr.bf16.mxu0 0
  %2072 = vmatpush1.bf16.msra.mxu0 %v2064
  %2073 = vmatprep.subr.bf16.mxu0 0
  %2074 = vmatpush1.bf16.msra.mxu0 %v2065
  %2075 = vmatprep.subr.bf16.mxu0 0
  %2076 = vmatpush1.bf16.msra.mxu0 0
  %2077 = vmatprep.subr.bf16.mxu0 0
  %2078 = vmatpush1.bf16.msra.mxu0 0
  %2079 = vmatprep.subr.bf16.mxu0 0
  %2080 = vmatpush1.bf16.msra.mxu0 0
  %2081 = vmatprep.subr.bf16.mxu0 0
  %2082 = vmatpush1.bf16.msra.mxu0 0
  %2083 = vmatprep.subr.bf16.mxu0 0
  %2084 = vmatpush1.bf16.msra.mxu0 0
  %2085 = vmatprep.subr.bf16.mxu0 0
  %2086 = vmatpush1.bf16.msra.mxu0 0
  %2087 = vmatprep.subr.bf16.mxu0 0
  %2088 = vmatpush1.bf16.msra.mxu0 0
  %2089 = vmatprep.subr.bf16.mxu0 0
  %2090 = vmatpush1.bf16.msra.mxu0 0
  %2091 = vmatprep.subr.bf16.mxu0 0
  %2092 = vmatpush1.bf16.msra.mxu0 0
  %2093 = vmatprep.subr.bf16.mxu0 0
  %2094 = vmatpush1.bf16.msra.mxu0 0
  %2095 = vmatprep.subr.bf16.mxu0 0
  %2096 = vmatpush1.bf16.msra.mxu0 0
  %2097 = vmatprep.subr.bf16.mxu0 0
  %2098 = vmatpush1.bf16.msra.mxu0 0
  %2099 = vmatprep.subr.bf16.mxu0 0
  %2100 = vmatpush1.bf16.msra.mxu0 0
  %2101 = vmatprep.subr.bf16.mxu0 0
  %2102 = vmatpush1.bf16.msra.mxu0 0
  %2103 = vmatprep.mubr.bf16.mxu0 0
  %2104 = vmatmul.mubr.bf16.gmra.mrb[0].mxu0 %v2069
  %v2105 = vpop.f32.mrb[0].mxu0
  %v2106 = vadd.f32 %v2055, %v2105
  %v2107 = vpop.f32.mrb[0].mxu0
  %v2108 = vpop.f32.mrb[0].mxu0
  %v2109 = vpop.f32.mrb[0].mxu0
  %2110 = vdwg.mxu0
  %v2111 = vld [vmem:[%s3 + $0x11] sm:$0x1]
  %v2112 = vld [vmem:[%s3 + $0x12] sm:$0x1]
  %v2113 = vsel %vm174, %v2106, 0.0
  %2114 = vadd.xlane.f32.xlu0 %v2113
  %v2115 = vpop.xlane.xlu0 %2114
  %v2116 = vmul.f32 %v2115, %v187
  %v2117 = vsub.f32 %v2106, %v2116
  %v2118 = vmul.f32 %v2117, %v2117
  %v2119 = vsel %vm174, %v2118, 0.0
  %2120 = vadd.xlane.f32.xlu0 %v2119
  %v2121 = vpop.xlane.xlu0 %2120
  %v2122 = vmul.f32 %v2121, %v187
  %v2123 = vadd.f32 %v2122, 1e-05
  %v2124 = vrsqrt.pop %v2123
  %v2125 = vmul.f32 %v2117, %v2124
  %v2126 = vlaneseq
  %v2127 = vshrl.u32 %v2126, 7
  %v2128 = vsub.s32 0, %v2127
  %v2129 = vrot.slane %v2111, %v2128
  %v2130 = vmul.f32 %v2125, %v2129
  %v2131 = vlaneseq
  %v2132 = vshrl.u32 %v2131, 7
  %v2133 = vsub.s32 0, %v2132
  %v2134 = vrot.slane %v2112, %v2133
  %v2135 = vadd.f32 %v2130, %v2134
  %v2136 = vmul.f32 %v2135, 0.5
  %v2137 = vmul.f32 %v2135, 0.70710677
  %v2138 = verf.f32.pop %v2137
  %v2139 = vadd.f32 %v2138, 1.0
  %v2140 = vmul.f32 %v2136, %v2139
  %v2141 = vpack.c.bf16 %v2140, %v2140
  %s2142 = scalar_lea.vmem %s1, 112
  %v2143 = vld [vmem:[%s2142] sm:$0xf]
  %v2144 = vld [vmem:[%s2142 + $0x4] sm:$0xf]
  %v2145 = vld [vmem:[%s2142 + $0x8] sm:$0xf]
  %v2146 = vld [vmem:[%s2142 + $0xc] sm:$0xf]
  %v2147 = vld [vmem:[%s3 + $0x13] sm:$0x1]
  %v2148 = vlaneseq
  %v2149 = vshrl.u32 %v2148, 7
  %v2150 = vsub.s32 0, %v2149
  %v2151 = vrot.slane %v2147, %v2150
  %v2156 = vunpack.c.l.b16 %v2143
  %v2157 = vunpack.c.l.b16 %v2144
  %v2158 = vunpack.c.l.b16 %v2145
  %v2159 = vunpack.c.l.b16 %v2146
  %v2160 = vpack.c.b16 %v2157, %v2156
  %v2161 = vpack.c.b16 %v2159, %v2158
  %v2165 = vsel %vm174, %v2141, 0
  %2167 = vmatprep.subr.bf16.mxu0 0
  %2168 = vmatpush1.bf16.msra.mxu0 %v2160
  %2169 = vmatprep.subr.bf16.mxu0 0
  %2170 = vmatpush1.bf16.msra.mxu0 %v2161
  %2171 = vmatprep.subr.bf16.mxu0 0
  %2172 = vmatpush1.bf16.msra.mxu0 0
  %2173 = vmatprep.subr.bf16.mxu0 0
  %2174 = vmatpush1.bf16.msra.mxu0 0
  %2175 = vmatprep.subr.bf16.mxu0 0
  %2176 = vmatpush1.bf16.msra.mxu0 0
  %2177 = vmatprep.subr.bf16.mxu0 0
  %2178 = vmatpush1.bf16.msra.mxu0 0
  %2179 = vmatprep.subr.bf16.mxu0 0
  %2180 = vmatpush1.bf16.msra.mxu0 0
  %2181 = vmatprep.subr.bf16.mxu0 0
  %2182 = vmatpush1.bf16.msra.mxu0 0
  %2183 = vmatprep.subr.bf16.mxu0 0
  %2184 = vmatpush1.bf16.msra.mxu0 0
  %2185 = vmatprep.subr.bf16.mxu0 0
  %2186 = vmatpush1.bf16.msra.mxu0 0
  %2187 = vmatprep.subr.bf16.mxu0 0
  %2188 = vmatpush1.bf16.msra.mxu0 0
  %2189 = vmatprep.subr.bf16.mxu0 0
  %2190 = vmatpush1.bf16.msra.mxu0 0
  %2191 = vmatprep.subr.bf16.mxu0 0
  %2192 = vmatpush1.bf16.msra.mxu0 0
  %2193 = vmatprep.subr.bf16.mxu0 0
  %2194 = vmatpush1.bf16.msra.mxu0 0
  %2195 = vmatprep.subr.bf16.mxu0 0
  %2196 = vmatpush1.bf16.msra.mxu0 0
  %2197 = vmatprep.subr.bf16.mxu0 0
  %2198 = vmatpush1.bf16.msra.mxu0 0
  %2199 = vmatprep.mubr.bf16.mxu0 0
  %2200 = vmatmul.mubr.bf16.gmra.mrb[0].mxu0 %v2165
  %v2201 = vpop.f32.mrb[0].mxu0
  %v2202 = vadd.f32 %v2151, %v2201
  %v2203 = vpop.f32.mrb[0].mxu0
  %v2204 = vpop.f32.mrb[0].mxu0
  %v2205 = vpop.f32.mrb[0].mxu0
  %2206 = vdwg.mxu0
  %v2207 = vld [vmem:[%s3 + $0x14] sm:$0x1]
  %v2208 = vld [vmem:[%s3 + $0x15] sm:$0x1]
  %v2209 = vsel %vm174, %v2202, 0.0
  %2210 = vadd.xlane.f32.xlu0 %v2209
  %v2211 = vpop.xlane.xlu0 %2210
  %v2212 = vmul.f32 %v2211, %v187
  %v2213 = vsub.f32 %v2202, %v2212
  %v2214 = vmul.f32 %v2213, %v2213
  %v2215 = vsel %vm174, %v2214, 0.0
  %2216 = vadd.xlane.f32.xlu0 %v2215
  %v2217 = vpop.xlane.xlu0 %2216
  %v2218 = vmul.f32 %v2217, %v187
  %v2219 = vadd.f32 %v2218, 1e-05
  %v2220 = vrsqrt.pop %v2219
  %v2221 = vmul.f32 %v2213, %v2220
  %v2222 = vlaneseq
  %v2223 = vshrl.u32 %v2222, 7
  %v2224 = vsub.s32 0, %v2223
  %v2225 = vrot.slane %v2207, %v2224
  %v2226 = vmul.f32 %v2221, %v2225
  %v2227 = vlaneseq
  %v2228 = vshrl.u32 %v2227, 7
  %v2229 = vsub.s32 0, %v2228
  %v2230 = vrot.slane %v2208, %v2229
  %v2231 = vadd.f32 %v2226, %v2230
  %v2232 = vmul.f32 %v2231, 0.5
  %v2233 = vmul.f32 %v2231, 0.70710677
  %v2234 = verf.f32.pop %v2233
  %v2235 = vadd.f32 %v2234, 1.0
  %v2236 = vmul.f32 %v2232, %v2235
  %v2237 = vpack.c.bf16 %v2236, %v2236
  %s2238 = scalar_lea.vmem %s1, 128
  %v2239 = vld [vmem:[%s2238] sm:$0xf]
  %v2240 = vld [vmem:[%s2238 + $0x4] sm:$0xf]
  %v2241 = vld [vmem:[%s2238 + $0x8] sm:$0xf]
  %v2242 = vld [vmem:[%s2238 + $0xc] sm:$0xf]
  %v2243 = vld [vmem:[%s3 + $0x16] sm:$0x1]
  %v2244 = vlaneseq
  %v2245 = vshrl.u32 %v2244, 7
  %v2246 = vsub.s32 0, %v2245
  %v2247 = vrot.slane %v2243, %v2246
  %v2252 = vunpack.c.l.b16 %v2239
  %v2253 = vunpack.c.l.b16 %v2240
  %v2254 = vunpack.c.l.b16 %v2241
  %v2255 = vunpack.c.l.b16 %v2242
  %v2256 = vpack.c.b16 %v2253, %v2252
  %v2257 = vpack.c.b16 %v2255, %v2254
  %v2261 = vsel %vm174, %v2237, 0
  %2263 = vmatprep.subr.bf16.mxu0 0
  %2264 = vmatpush1.bf16.msra.mxu0 %v2256
  %2265 = vmatprep.subr.bf16.mxu0 0
  %2266 = vmatpush1.bf16.msra.mxu0 %v2257
  %2267 = vmatprep.subr.bf16.mxu0 0
  %2268 = vmatpush1.bf16.msra.mxu0 0
  %2269 = vmatprep.subr.bf16.mxu0 0
  %2270 = vmatpush1.bf16.msra.mxu0 0
  %2271 = vmatprep.subr.bf16.mxu0 0
  %2272 = vmatpush1.bf16.msra.mxu0 0
  %2273 = vmatprep.subr.bf16.mxu0 0
  %2274 = vmatpush1.bf16.msra.mxu0 0
  %2275 = vmatprep.subr.bf16.mxu0 0
  %2276 = vmatpush1.bf16.msra.mxu0 0
  %2277 = vmatprep.subr.bf16.mxu0 0
  %2278 = vmatpush1.bf16.msra.mxu0 0
  %2279 = vmatprep.subr.bf16.mxu0 0
  %2280 = vmatpush1.bf16.msra.mxu0 0
  %2281 = vmatprep.subr.bf16.mxu0 0
  %2282 = vmatpush1.bf16.msra.mxu0 0
  %2283 = vmatprep.subr.bf16.mxu0 0
  %2284 = vmatpush1.bf16.msra.mxu0 0
  %2285 = vmatprep.subr.bf16.mxu0 0
  %2286 = vmatpush1.bf16.msra.mxu0 0
  %2287 = vmatprep.subr.bf16.mxu0 0
  %2288 = vmatpush1.bf16.msra.mxu0 0
  %2289 = vmatprep.subr.bf16.mxu0 0
  %2290 = vmatpush1.bf16.msra.mxu0 0
  %2291 = vmatprep.subr.bf16.mxu0 0
  %2292 = vmatpush1.bf16.msra.mxu0 0
  %2293 = vmatprep.subr.bf16.mxu0 0
  %2294 = vmatpush1.bf16.msra.mxu0 0
  %2295 = vmatprep.mubr.bf16.mxu0 0
  %2296 = vmatmul.mubr.bf16.gmra.mrb[0].mxu0 %v2261
  %v2297 = vpop.f32.mrb[0].mxu0
  %v2298 = vadd.f32 %v2247, %v2297
  %v2299 = vpop.f32.mrb[0].mxu0
  %v2300 = vpop.f32.mrb[0].mxu0
  %v2301 = vpop.f32.mrb[0].mxu0
  %2302 = vdwg.mxu0
  %2303 = vst [vmem:[%s5] sm:$0xff] %v2298
  // Predicated region
  $region22: #{conv_transformer_policy.1} parent=0 // pred_check
    _
  $region23: #{conv_transformer_policy.1} parent=0 // pred_check_branch
    %2305 = sbr.rel (0) target = $region25
  $region24: #{conv_transformer_policy.1} parent=0 // pred_region
    _
  $region25: #{conv_transformer_policy.1} parent=0 // pred_fallthru
    _
  // Predicated region
  $region26: #{conv_transformer_policy.1} parent=0 // pred_check
    _
  $region27: #{conv_transformer_policy.1} parent=0 // pred_check_branch
    %2307 = sbr.rel (0) target = $region29
  $region28: #{conv_transformer_policy.1} parent=0 // pred_region
    _
  $region29: #{conv_transformer_policy.1} parent=0 // pred_fallthru
    _

</llo_original>
